<compile_context>
chip_gen: v6e
topology: v6e:2x2x1
jax: 0.10.0
libtpu: 0.0.40
codegen_flags: <defaults>
</compile_context>

<pallas_src>
import functools
import math

import jax
import jax.numpy as jnp
import numpy as np
from jax.experimental import pallas as pl
from jax.experimental.pallas import tpu as pltpu


# ------------------------------ Pallas kernel -------------------------------


def _cnn_fused_kernel(x1_ref, w1_ref, s1_ref, b1_ref,
                      w2_ref, s2_ref, b2_ref,
                      w3_ref, s3_ref, b3_ref,
                      pt_ref, o_ref,
                      *, K, L_conv1, L_conv2, L_conv3):
    """Fused forward for a single batch element (grid axis = batch).

    x1_ref: (L_conv1, K*C_in)   im2col of the block-1 (stride-2) conv input
    w1_ref: (K*C_in, 64)        block-1 conv weights, im2col layout
    w2_ref: (4, 128, 64)        block-2 weights, adjacent taps pair-folded
    w3_ref: (4, 128, 128)       block-3 weights, adjacent taps pair-folded
    s*_ref/b*_ref: (1, C)       folded BatchNorm scale / bias
    pt_ref: (F, L_pool3)        adaptive-avg-pool bin weights
    o_ref:  (F, 128)            pooled output (lane-dense; transposed outside)
    """
    f32 = jnp.float32

    def bn_relu(acc, s_ref, b_ref):
        return jnp.maximum(acc * s_ref[...] + b_ref[...], 0.0)

    def maxpool2(y, L_conv):
        # MaxPool1d(kernel=2, stride=2, padding=1).  y is post-ReLU (>= 0),
        # so the implicit -inf pad rows reduce to "just take the edge row".
        c = y.shape[1]
        n_pairs = (L_conv - 1) // 2
        pieces = [y[0:1, :]]                       # window 0 = {pad, y[0]}
        if n_pairs > 0:
            pieces.append(jnp.max(
                y[1:1 + 2 * n_pairs, :].reshape(n_pairs, 2, c), axis=1))
        if L_conv % 2 == 0:                        # trailing {y[-1], pad}
            pieces.append(y[L_conv - 1:L_conv, :])
        return jnp.concatenate(pieces, axis=0)

    def conv_stride1_pairs(h, w_ref, L_conv):
        # Stride-1 Conv1d(k=8, pad=4, no bias).  Adjacent taps (2p, 2p+1) are
        # folded: windows become contiguous sublane slices of xx and each dot
        # has a 2*C = 128 deep contraction.
        c = h.shape[1]
        zp = jnp.zeros((4, c), f32)
        xp = jnp.concatenate([zp, h, zp], axis=0)               # (L_in+8, C)
        xx = jnp.concatenate([xp[:-1, :], xp[1:, :]], axis=1)   # (L_in+7, 2C)
        c_out = w_ref.shape[-1]
        acc = jnp.zeros((L_conv, c_out), f32)
        for p in range(K // 2):                                  # static unroll
            acc = acc + jnp.dot(xx[2 * p:2 * p + L_conv, :], w_ref[p],
                                preferred_element_type=f32)
        return acc

    # ---- conv_block1: stride-2 conv as one im2col matmul ----
    y1 = jnp.dot(x1_ref[...], w1_ref[...], preferred_element_type=f32)
    h1 = maxpool2(bn_relu(y1, s1_ref, b1_ref), L_conv1)          # (L_pool1, 64)

    # ---- conv_block2 ----
    y2 = conv_stride1_pairs(h1, w2_ref, L_conv2)
    h2 = maxpool2(bn_relu(y2, s2_ref, b2_ref), L_conv2)          # (L_pool2, 64)

    # ---- conv_block3 ----
    y3 = conv_stride1_pairs(h2, w3_ref, L_conv3)
    h3 = maxpool2(bn_relu(y3, s3_ref, b3_ref), L_conv3)          # (L_pool3, 128)

    # ---- AdaptiveAvgPool1d as a (F, L) x (L, C) matmul ----
    o_ref[...] = jnp.dot(pt_ref[...], h3, preferred_element_type=f32)


# ------------------------------ Pallas wrapper -------------------------------


def cnn_forward(x_ncl, params):
    """x_ncl: (N, C_in, L) float32 (PyTorch NCL). Returns (N, 128 * 10)."""
    n, c_in, L = x_ncl.shape
    K, pad, F = 8, 4, 10
    eps = 1e-5

    w1, w2, w3 = params["w1"], params["w2"], params["w3"]
    c_mid = w1.shape[0]          # 64
    c_fin = w3.shape[0]          # 128

    # Sequence lengths through the network (conv pad=4, k=8; pool k=2,s=2,p=1).
    L_conv1 = (L + 2 * pad - K) // 2 + 1
    L_pool1 = L_conv1 // 2 + 1
    L_conv2 = L_pool1 + 1
    L_pool2 = L_conv2 // 2 + 1
    L_conv3 = L_pool2 + 1
    L_pool3 = L_conv3 // 2 + 1

    def fold(bn):
        gamma, beta, mean, var = bn
        scale = gamma / jnp.sqrt(var + eps)
        return (scale.reshape(1, -1).astype(jnp.float32),
                (beta - mean * scale).reshape(1, -1).astype(jnp.float32))

    s1, b1 = fold(params["bn1"])
    s2, b2 = fold(params["bn2"])
    s3, b3 = fold(params["bn3"])

    # --- block1 im2col: stride-2 conv -> one (L_conv1, K*C_in) matmul operand.
    # (Tiny: the raw input is only a few KB; replaces per-block pad/transpose.)
    x_pad = jnp.pad(x_ncl.astype(jnp.float32), ((0, 0), (0, 0), (pad, pad)))
    idx = 2 * jnp.arange(L_conv1)[:, None] + jnp.arange(K)[None, :]
    win = jnp.transpose(x_pad[:, :, idx], (0, 2, 3, 1))    # (N, L_conv1, K, C_in)
    x1 = win.reshape(n, L_conv1, K * c_in)

    # --- weights: (C_out, C_in, K) PyTorch layout -> matmul layouts.
    w1f = jnp.transpose(w1, (2, 1, 0)).reshape(K * c_in, c_mid).astype(jnp.float32)
    w2p = jnp.transpose(w2, (2, 1, 0)).reshape(K // 2, 2 * c_mid, c_mid).astype(jnp.float32)
    w3p = jnp.transpose(w3, (2, 1, 0)).reshape(K // 2, 2 * c_mid, c_fin).astype(jnp.float32)

    # --- adaptive-pool bin weights (PyTorch AdaptiveAvgPool1d bins), host-side.
    pt_np = np.zeros((F, L_pool3), np.float32)
    for j in range(F):
        s = (j * L_pool3) // F
        e = -((-(j + 1) * L_pool3) // F)                   # ceil((j+1)*L/F)
        pt_np[j, s:e] = 1.0 / (e - s)
    pt = jnp.asarray(pt_np)

    kernel = functools.partial(_cnn_fused_kernel, K=K,
                               L_conv1=L_conv1, L_conv2=L_conv2, L_conv3=L_conv3)

    pooled_nfc = pl.pallas_call(
        kernel,
        out_shape=jax.ShapeDtypeStruct((n, F, c_fin), jnp.float32),
        grid_spec=pltpu.PrefetchScalarGridSpec(
            num_scalar_prefetch=0,
            grid=(n,),
            in_specs=[
                pl.BlockSpec((pl.Squeezed(), L_conv1, K * c_in), lambda b: (b, 0, 0)),
                pl.BlockSpec((K * c_in, c_mid), lambda b: (0, 0)),
                pl.BlockSpec((1, c_mid), lambda b: (0, 0)),
                pl.BlockSpec((1, c_mid), lambda b: (0, 0)),
                pl.BlockSpec((K // 2, 2 * c_mid, c_mid), lambda b: (0, 0, 0)),
                pl.BlockSpec((1, c_mid), lambda b: (0, 0)),
                pl.BlockSpec((1, c_mid), lambda b: (0, 0)),
                pl.BlockSpec((K // 2, 2 * c_mid, c_fin), lambda b: (0, 0, 0)),
                pl.BlockSpec((1, c_fin), lambda b: (0, 0)),
                pl.BlockSpec((1, c_fin), lambda b: (0, 0)),
                pl.BlockSpec((F, L_pool3), lambda b: (0, 0)),
            ],
            out_specs=pl.BlockSpec((pl.Squeezed(), F, c_fin), lambda b: (b, 0, 0)),
        ),
        compiler_params=pltpu.CompilerParams(
            dimension_semantics=("parallel",)),    # 2 TCs on v7x; no-op v5e/v6e
    )(x1, w1f, s1, b1, w2p, s2, b2, w3p, s3, b3, pt)

    # (N, F, C) lane-dense kernel output -> (N, C, F) -> flatten (== PyTorch
    # x.view(N, -1)).  Tiny (10 KB) wrapper transpose.
    return jnp.transpose(pooled_nfc, (0, 2, 1)).reshape(n, -1)


# ------------------------------ pure-JAX reference --------------------------


def reference_forward(x_ncl, params):
    eps = 1e-5

    def block(h, w, bn, stride):
        gamma, beta, mean, var = bn
        y = jax.lax.conv_general_dilated(
            h, w, window_strides=(stride,), padding=[(4, 4)],
            dimension_numbers=("NCH", "OIH", "NCH"),
            precision=jax.lax.Precision.HIGHEST)
        scale = gamma / jnp.sqrt(var + eps)
        shift = beta - mean * scale
        y = jnp.maximum(y * scale[None, :, None] + shift[None, :, None], 0.0)
        return jax.lax.reduce_window(y, -jnp.inf, jax.lax.max,
                                     (1, 1, 2), (1, 1, 2),
                                     [(0, 0), (0, 0), (1, 1)])

    h = block(x_ncl, params["w1"], params["bn1"], 2)
    h = block(h, params["w2"], params["bn2"], 1)
    h = block(h, params["w3"], params["bn3"], 1)
    n, c, L = h.shape
    F = 10
    cols = []
    for j in range(F):
        s = (j * L) // F
        e = -((-(j + 1) * L) // F)
        cols.append(jnp.mean(h[:, :, s:e], axis=-1))
    pooled = jnp.stack(cols, axis=-1)                   # (N, C, F)
    return pooled.reshape(n, -1)


# ------------------------------ params / main -------------------------------


def init_params(key, input_channels):
    mid, fin, K = 64, 128, 8

    def conv_w(k, c_out, c_in):
        bound = 1.0 / math.sqrt(c_in * K)
        return jax.random.uniform(k, (c_out, c_in, K), jnp.float32,
                                  -bound, bound)

    def bn(k, c):
        k1, k2, k3, k4 = jax.random.split(k, 4)
        gamma = 1.0 + 0.1 * jax.random.normal(k1, (c,), jnp.float32)
        beta = 0.1 * jax.random.normal(k2, (c,), jnp.float32)
        mean = 0.1 * jax.random.normal(k3, (c,), jnp.float32)
        var = 1.0 + 0.5 * jax.random.uniform(k4, (c,), jnp.float32)
        return gamma, beta, mean, var

    ks = jax.random.split(key, 6)
    return {
        "w1": conv_w(ks[0], mid, input_channels), "bn1": bn(ks[1], mid),
        "w2": conv_w(ks[2], mid, mid),            "bn2": bn(ks[3], mid),
        "w3": conv_w(ks[4], fin, mid),            "bn3": bn(ks[5], fin),
    }


if __name__ == "__main__":
    N, C_IN, SEQ_LEN = 2, 4, 128          # input_channels=4, sequence_len=128
    key = jax.random.PRNGKey(0)
    k_x, k_p = jax.random.split(key)
    x = jax.random.normal(k_x, (N, C_IN, SEQ_LEN), jnp.float32)
    params = init_params(k_p, C_IN)

    fwd = jax.jit(cnn_forward)
    ref_fwd = jax.jit(reference_forward)

    out = jax.block_until_ready(fwd(x, params))
    ref = jax.block_until_ready(ref_fwd(x, params))

    assert out.shape == (N, 128 * 10), out.shape
    # Kernel matmuls use default (single-pass) MXU precision, reference is
    # fp32 HIGHEST -> expect ~1e-3..1e-2 absolute differences on O(1) values.
    np.testing.assert_allclose(np.asarray(out), np.asarray(ref),
                               rtol=3e-2, atol=3e-2)
    print("KERNEL_OK")
</pallas_src>

<mosaic_0001>
module attributes {stable_mosaic.version = 11 : i64} {
  func.func @_cnn_fused_kernel(%arg0: i32, %arg1: memref<1x65x32xf32, #tpu.memory_space<vmem>>, %arg2: memref<32x64xf32, #tpu.memory_space<vmem>>, %arg3: memref<1x64xf32, #tpu.memory_space<vmem>>, %arg4: memref<1x64xf32, #tpu.memory_space<vmem>>, %arg5: memref<4x128x64xf32, #tpu.memory_space<vmem>>, %arg6: memref<1x64xf32, #tpu.memory_space<vmem>>, %arg7: memref<1x64xf32, #tpu.memory_space<vmem>>, %arg8: memref<4x128x128xf32, #tpu.memory_space<vmem>>, %arg9: memref<1x128xf32, #tpu.memory_space<vmem>>, %arg10: memref<1x128xf32, #tpu.memory_space<vmem>>, %arg11: memref<10x10xf32, #tpu.memory_space<vmem>>, %arg12: memref<1x10x128xf32, #tpu.memory_space<vmem>>) attributes {dimension_semantics = [#tpu.dimension_semantics<parallel>], iteration_bounds = array<i64: 2>, scalar_prefetch = 0 : i64, scratch_operands = 0 : i64, tpu.core_type = #tpu.core_type<tc>, window_params = [{transform_indices = @transform_0, window_bounds = array<i64: 1, 65, 32>}, {pipeline_mode = #tpu.pipeline_mode<synchronous>, transform_indices = @transform_1, window_bounds = array<i64: 32, 64>}, {pipeline_mode = #tpu.pipeline_mode<synchronous>, transform_indices = @transform_2, window_bounds = array<i64: 1, 64>}, {pipeline_mode = #tpu.pipeline_mode<synchronous>, transform_indices = @transform_3, window_bounds = array<i64: 1, 64>}, {pipeline_mode = #tpu.pipeline_mode<synchronous>, transform_indices = @transform_4, window_bounds = array<i64: 4, 128, 64>}, {pipeline_mode = #tpu.pipeline_mode<synchronous>, transform_indices = @transform_5, window_bounds = array<i64: 1, 64>}, {pipeline_mode = #tpu.pipeline_mode<synchronous>, transform_indices = @transform_6, window_bounds = array<i64: 1, 64>}, {pipeline_mode = #tpu.pipeline_mode<synchronous>, transform_indices = @transform_7, window_bounds = array<i64: 4, 128, 128>}, {pipeline_mode = #tpu.pipeline_mode<synchronous>, transform_indices = @transform_8, window_bounds = array<i64: 1, 128>}, {pipeline_mode = #tpu.pipeline_mode<synchronous>, transform_indices = @transform_9, window_bounds = array<i64: 1, 128>}, {pipeline_mode = #tpu.pipeline_mode<synchronous>, transform_indices = @transform_10, window_bounds = array<i64: 10, 10>}, {transform_indices = @transform_11, window_bounds = array<i64: 1, 10, 128>}]} {
    %c0 = arith.constant 0 : index
    %c0_0 = arith.constant 0 : index
    %c0_1 = arith.constant 0 : index
    %0 = vector.load %arg1[%c0, %c0_0, %c0_1] : memref<1x65x32xf32, #tpu.memory_space<vmem>>, vector<1x65x32xf32>
    %1 = vector.shape_cast %0 : vector<1x65x32xf32> to vector<65x32xf32>
    %c0_2 = arith.constant 0 : index
    %c0_3 = arith.constant 0 : index
    %2 = vector.load %arg2[%c0_2, %c0_3] : memref<32x64xf32, #tpu.memory_space<vmem>>, vector<32x64xf32>
    %cst = arith.constant dense<0.000000e+00> : vector<65x64xf32>
    %3 = tpu.matmul %1, %2, %cst {dimension_numbers = #tpu.dot_dimension_numbers<[1], [0], [0], [1], [0, 0, 1, 1], [], []>} : vector<65x32xf32>, vector<32x64xf32>, vector<65x64xf32> -> vector<65x64xf32>
    %c0_4 = arith.constant 0 : index
    %c0_5 = arith.constant 0 : index
    %4 = vector.load %arg3[%c0_4, %c0_5] : memref<1x64xf32, #tpu.memory_space<vmem>>, vector<1x64xf32>
    %5 = vector.broadcast %4 : vector<1x64xf32> to vector<65x64xf32>
    %6 = arith.mulf %3, %5 : vector<65x64xf32>
    %c0_6 = arith.constant 0 : index
    %c0_7 = arith.constant 0 : index
    %7 = vector.load %arg4[%c0_6, %c0_7] : memref<1x64xf32, #tpu.memory_space<vmem>>, vector<1x64xf32>
    %8 = vector.broadcast %7 : vector<1x64xf32> to vector<65x64xf32>
    %9 = arith.addf %6, %8 : vector<65x64xf32>
    %cst_8 = arith.constant 0.000000e+00 : f32
    %10 = vector.broadcast %cst_8 : f32 to vector<65x64xf32>
    %11 = arith.maximumf %9, %10 : vector<65x64xf32>
    %12 = vector.extract_strided_slice %11 {offsets = [0, 0], sizes = [1, 64], strides = [1, 1]} : vector<65x64xf32> to vector<1x64xf32>
    %13 = vector.extract_strided_slice %11 {offsets = [1, 0], sizes = [64, 64], strides = [1, 1]} : vector<65x64xf32> to vector<64x64xf32>
    %14 = vector.shape_cast %13 : vector<64x64xf32> to vector<32x2x64xf32>
    %cst_9 = arith.constant dense<0xFF800000> : vector<32x64xf32>
    %15 = vector.multi_reduction <maximumf>, %14, %cst_9 [1] : vector<32x2x64xf32> to vector<32x64xf32>
    %16 = tpu.concatenate %12, %15 in 0 : vector<1x64xf32>, vector<32x64xf32> -> vector<33x64xf32>
    %cst_10 = arith.constant 0.000000e+00 : f32
    %17 = vector.broadcast %cst_10 : f32 to vector<4x64xf32>
    %18 = tpu.concatenate %17, %16, %17 in 0 : vector<4x64xf32>, vector<33x64xf32>, vector<4x64xf32> -> vector<41x64xf32>
    %19 = vector.extract_strided_slice %18 {offsets = [0, 0], sizes = [40, 64], strides = [1, 1]} : vector<41x64xf32> to vector<40x64xf32>
    %20 = vector.extract_strided_slice %18 {offsets = [1, 0], sizes = [40, 64], strides = [1, 1]} : vector<41x64xf32> to vector<40x64xf32>
    %21 = tpu.concatenate %19, %20 in 1 : vector<40x64xf32>, vector<40x64xf32> -> vector<40x128xf32>
    %cst_11 = arith.constant 0.000000e+00 : f32
    %22 = vector.broadcast %cst_11 : f32 to vector<34x64xf32>
    %23 = vector.extract_strided_slice %21 {offsets = [0, 0], sizes = [34, 128], strides = [1, 1]} : vector<40x128xf32> to vector<34x128xf32>
    %c0_12 = arith.constant 0 : index
    %c0_13 = arith.constant 0 : index
    %c0_14 = arith.constant 0 : index
    %24 = vector.load %arg5[%c0_12, %c0_13, %c0_14] : memref<4x128x64xf32, #tpu.memory_space<vmem>>, vector<1x128x64xf32>
    %25 = vector.shape_cast %24 : vector<1x128x64xf32> to vector<128x64xf32>
    %cst_15 = arith.constant dense<0.000000e+00> : vector<34x64xf32>
    %26 = tpu.matmul %23, %25, %cst_15 {dimension_numbers = #tpu.dot_dimension_numbers<[1], [0], [0], [1], [0, 0, 1, 1], [], []>} : vector<34x128xf32>, vector<128x64xf32>, vector<34x64xf32> -> vector<34x64xf32>
    %27 = arith.addf %22, %26 : vector<34x64xf32>
    %28 = vector.extract_strided_slice %21 {offsets = [2, 0], sizes = [34, 128], strides = [1, 1]} : vector<40x128xf32> to vector<34x128xf32>
    %c1 = arith.constant 1 : index
    %c0_16 = arith.constant 0 : index
    %c0_17 = arith.constant 0 : index
    %29 = vector.load %arg5[%c1, %c0_16, %c0_17] : memref<4x128x64xf32, #tpu.memory_space<vmem>>, vector<1x128x64xf32>
    %30 = vector.shape_cast %29 : vector<1x128x64xf32> to vector<128x64xf32>
    %cst_18 = arith.constant dense<0.000000e+00> : vector<34x64xf32>
    %31 = tpu.matmul %28, %30, %cst_18 {dimension_numbers = #tpu.dot_dimension_numbers<[1], [0], [0], [1], [0, 0, 1, 1], [], []>} : vector<34x128xf32>, vector<128x64xf32>, vector<34x64xf32> -> vector<34x64xf32>
    %32 = arith.addf %27, %31 : vector<34x64xf32>
    %33 = vector.extract_strided_slice %21 {offsets = [4, 0], sizes = [34, 128], strides = [1, 1]} : vector<40x128xf32> to vector<34x128xf32>
    %c2 = arith.constant 2 : index
    %c0_19 = arith.constant 0 : index
    %c0_20 = arith.constant 0 : index
    %34 = vector.load %arg5[%c2, %c0_19, %c0_20] : memref<4x128x64xf32, #tpu.memory_space<vmem>>, vector<1x128x64xf32>
    %35 = vector.shape_cast %34 : vector<1x128x64xf32> to vector<128x64xf32>
    %cst_21 = arith.constant dense<0.000000e+00> : vector<34x64xf32>
    %36 = tpu.matmul %33, %35, %cst_21 {dimension_numbers = #tpu.dot_dimension_numbers<[1], [0], [0], [1], [0, 0, 1, 1], [], []>} : vector<34x128xf32>, vector<128x64xf32>, vector<34x64xf32> -> vector<34x64xf32>
    %37 = arith.addf %32, %36 : vector<34x64xf32>
    %38 = vector.extract_strided_slice %21 {offsets = [6, 0], sizes = [34, 128], strides = [1, 1]} : vector<40x128xf32> to vector<34x128xf32>
    %c3 = arith.constant 3 : index
    %c0_22 = arith.constant 0 : index
    %c0_23 = arith.constant 0 : index
    %39 = vector.load %arg5[%c3, %c0_22, %c0_23] : memref<4x128x64xf32, #tpu.memory_space<vmem>>, vector<1x128x64xf32>
    %40 = vector.shape_cast %39 : vector<1x128x64xf32> to vector<128x64xf32>
    %cst_24 = arith.constant dense<0.000000e+00> : vector<34x64xf32>
    %41 = tpu.matmul %38, %40, %cst_24 {dimension_numbers = #tpu.dot_dimension_numbers<[1], [0], [0], [1], [0, 0, 1, 1], [], []>} : vector<34x128xf32>, vector<128x64xf32>, vector<34x64xf32> -> vector<34x64xf32>
    %42 = arith.addf %37, %41 : vector<34x64xf32>
    %c0_25 = arith.constant 0 : index
    %c0_26 = arith.constant 0 : index
    %43 = vector.load %arg6[%c0_25, %c0_26] : memref<1x64xf32, #tpu.memory_space<vmem>>, vector<1x64xf32>
    %44 = vector.broadcast %43 : vector<1x64xf32> to vector<34x64xf32>
    %45 = arith.mulf %42, %44 : vector<34x64xf32>
    %c0_27 = arith.constant 0 : index
    %c0_28 = arith.constant 0 : index
    %46 = vector.load %arg7[%c0_27, %c0_28] : memref<1x64xf32, #tpu.memory_space<vmem>>, vector<1x64xf32>
    %47 = vector.broadcast %46 : vector<1x64xf32> to vector<34x64xf32>
    %48 = arith.addf %45, %47 : vector<34x64xf32>
    %cst_29 = arith.constant 0.000000e+00 : f32
    %49 = vector.broadcast %cst_29 : f32 to vector<34x64xf32>
    %50 = arith.maximumf %48, %49 : vector<34x64xf32>
    %51 = vector.extract_strided_slice %50 {offsets = [0, 0], sizes = [1, 64], strides = [1, 1]} : vector<34x64xf32> to vector<1x64xf32>
    %52 = vector.extract_strided_slice %50 {offsets = [1, 0], sizes = [32, 64], strides = [1, 1]} : vector<34x64xf32> to vector<32x64xf32>
    %53 = vector.shape_cast %52 : vector<32x64xf32> to vector<16x2x64xf32>
    %cst_30 = arith.constant dense<0xFF800000> : vector<16x64xf32>
    %54 = vector.multi_reduction <maximumf>, %53, %cst_30 [1] : vector<16x2x64xf32> to vector<16x64xf32>
    %55 = vector.extract_strided_slice %50 {offsets = [33, 0], sizes = [1, 64], strides = [1, 1]} : vector<34x64xf32> to vector<1x64xf32>
    %56 = tpu.concatenate %51, %54, %55 in 0 : vector<1x64xf32>, vector<16x64xf32>, vector<1x64xf32> -> vector<18x64xf32>
    %cst_31 = arith.constant 0.000000e+00 : f32
    %57 = vector.broadcast %cst_31 : f32 to vector<4x64xf32>
    %58 = tpu.concatenate %57, %56, %57 in 0 : vector<4x64xf32>, vector<18x64xf32>, vector<4x64xf32> -> vector<26x64xf32>
    %59 = vector.extract_strided_slice %58 {offsets = [0, 0], sizes = [25, 64], strides = [1, 1]} : vector<26x64xf32> to vector<25x64xf32>
    %60 = vector.extract_strided_slice %58 {offsets = [1, 0], sizes = [25, 64], strides = [1, 1]} : vector<26x64xf32> to vector<25x64xf32>
    %61 = tpu.concatenate %59, %60 in 1 : vector<25x64xf32>, vector<25x64xf32> -> vector<25x128xf32>
    %cst_32 = arith.constant 0.000000e+00 : f32
    %62 = vector.broadcast %cst_32 : f32 to vector<19x128xf32>
    %63 = vector.extract_strided_slice %61 {offsets = [0, 0], sizes = [19, 128], strides = [1, 1]} : vector<25x128xf32> to vector<19x128xf32>
    %c0_33 = arith.constant 0 : index
    %c0_34 = arith.constant 0 : index
    %c0_35 = arith.constant 0 : index
    %64 = vector.load %arg8[%c0_33, %c0_34, %c0_35] : memref<4x128x128xf32, #tpu.memory_space<vmem>>, vector<1x128x128xf32>
    %65 = vector.shape_cast %64 : vector<1x128x128xf32> to vector<128x128xf32>
    %cst_36 = arith.constant dense<0.000000e+00> : vector<19x128xf32>
    %66 = tpu.matmul %63, %65, %cst_36 {dimension_numbers = #tpu.dot_dimension_numbers<[1], [0], [0], [1], [0, 0, 1, 1], [], []>} : vector<19x128xf32>, vector<128x128xf32>, vector<19x128xf32> -> vector<19x128xf32>
    %67 = arith.addf %62, %66 : vector<19x128xf32>
    %68 = vector.extract_strided_slice %61 {offsets = [2, 0], sizes = [19, 128], strides = [1, 1]} : vector<25x128xf32> to vector<19x128xf32>
    %c1_37 = arith.constant 1 : index
    %c0_38 = arith.constant 0 : index
    %c0_39 = arith.constant 0 : index
    %69 = vector.load %arg8[%c1_37, %c0_38, %c0_39] : memref<4x128x128xf32, #tpu.memory_space<vmem>>, vector<1x128x128xf32>
    %70 = vector.shape_cast %69 : vector<1x128x128xf32> to vector<128x128xf32>
    %cst_40 = arith.constant dense<0.000000e+00> : vector<19x128xf32>
    %71 = tpu.matmul %68, %70, %cst_40 {dimension_numbers = #tpu.dot_dimension_numbers<[1], [0], [0], [1], [0, 0, 1, 1], [], []>} : vector<19x128xf32>, vector<128x128xf32>, vector<19x128xf32> -> vector<19x128xf32>
    %72 = arith.addf %67, %71 : vector<19x128xf32>
    %73 = vector.extract_strided_slice %61 {offsets = [4, 0], sizes = [19, 128], strides = [1, 1]} : vector<25x128xf32> to vector<19x128xf32>
    %c2_41 = arith.constant 2 : index
    %c0_42 = arith.constant 0 : index
    %c0_43 = arith.constant 0 : index
    %74 = vector.load %arg8[%c2_41, %c0_42, %c0_43] : memref<4x128x128xf32, #tpu.memory_space<vmem>>, vector<1x128x128xf32>
    %75 = vector.shape_cast %74 : vector<1x128x128xf32> to vector<128x128xf32>
    %cst_44 = arith.constant dense<0.000000e+00> : vector<19x128xf32>
    %76 = tpu.matmul %73, %75, %cst_44 {dimension_numbers = #tpu.dot_dimension_numbers<[1], [0], [0], [1], [0, 0, 1, 1], [], []>} : vector<19x128xf32>, vector<128x128xf32>, vector<19x128xf32> -> vector<19x128xf32>
    %77 = arith.addf %72, %76 : vector<19x128xf32>
    %78 = vector.extract_strided_slice %61 {offsets = [6, 0], sizes = [19, 128], strides = [1, 1]} : vector<25x128xf32> to vector<19x128xf32>
    %c3_45 = arith.constant 3 : index
    %c0_46 = arith.constant 0 : index
    %c0_47 = arith.constant 0 : index
    %79 = vector.load %arg8[%c3_45, %c0_46, %c0_47] : memref<4x128x128xf32, #tpu.memory_space<vmem>>, vector<1x128x128xf32>
    %80 = vector.shape_cast %79 : vector<1x128x128xf32> to vector<128x128xf32>
    %cst_48 = arith.constant dense<0.000000e+00> : vector<19x128xf32>
    %81 = tpu.matmul %78, %80, %cst_48 {dimension_numbers = #tpu.dot_dimension_numbers<[1], [0], [0], [1], [0, 0, 1, 1], [], []>} : vector<19x128xf32>, vector<128x128xf32>, vector<19x128xf32> -> vector<19x128xf32>
    %82 = arith.addf %77, %81 : vector<19x128xf32>
    %c0_49 = arith.constant 0 : index
    %c0_50 = arith.constant 0 : index
    %83 = vector.load %arg9[%c0_49, %c0_50] : memref<1x128xf32, #tpu.memory_space<vmem>>, vector<1x128xf32>
    %84 = vector.broadcast %83 : vector<1x128xf32> to vector<19x128xf32>
    %85 = arith.mulf %82, %84 : vector<19x128xf32>
    %c0_51 = arith.constant 0 : index
    %c0_52 = arith.constant 0 : index
    %86 = vector.load %arg10[%c0_51, %c0_52] : memref<1x128xf32, #tpu.memory_space<vmem>>, vector<1x128xf32>
    %87 = vector.broadcast %86 : vector<1x128xf32> to vector<19x128xf32>
    %88 = arith.addf %85, %87 : vector<19x128xf32>
    %cst_53 = arith.constant 0.000000e+00 : f32
    %89 = vector.broadcast %cst_53 : f32 to vector<19x128xf32>
    %90 = arith.maximumf %88, %89 : vector<19x128xf32>
    %91 = vector.extract_strided_slice %90 {offsets = [0, 0], sizes = [1, 128], strides = [1, 1]} : vector<19x128xf32> to vector<1x128xf32>
    %92 = vector.extract_strided_slice %90 {offsets = [1, 0], sizes = [18, 128], strides = [1, 1]} : vector<19x128xf32> to vector<18x128xf32>
    %93 = vector.shape_cast %92 : vector<18x128xf32> to vector<9x2x128xf32>
    %cst_54 = arith.constant dense<0xFF800000> : vector<9x128xf32>
    %94 = vector.multi_reduction <maximumf>, %93, %cst_54 [1] : vector<9x2x128xf32> to vector<9x128xf32>
    %95 = tpu.concatenate %91, %94 in 0 : vector<1x128xf32>, vector<9x128xf32> -> vector<10x128xf32>
    %c0_55 = arith.constant 0 : index
    %c0_56 = arith.constant 0 : index
    %96 = vector.load %arg11[%c0_55, %c0_56] : memref<10x10xf32, #tpu.memory_space<vmem>>, vector<10x10xf32>
    %cst_57 = arith.constant dense<0.000000e+00> : vector<10x128xf32>
    %97 = tpu.matmul %96, %95, %cst_57 {dimension_numbers = #tpu.dot_dimension_numbers<[1], [0], [0], [1], [0, 0, 1, 1], [], []>} : vector<10x10xf32>, vector<10x128xf32>, vector<10x128xf32> -> vector<10x128xf32>
    %c0_58 = arith.constant 0 : index
    %c0_59 = arith.constant 0 : index
    %c0_60 = arith.constant 0 : index
    %98 = vector.load %arg12[%c0_58, %c0_59, %c0_60] : memref<1x10x128xf32, #tpu.memory_space<vmem>>, vector<1x10x128xf32>
    %99 = vector.shape_cast %98 : vector<1x10x128xf32> to vector<10x128xf32>
    %100 = vector.shape_cast %97 : vector<10x128xf32> to vector<1x10x128xf32>
    tpu.vector_store %arg12[%c0_58, %c0_59, %c0_60], %100 {strides = array<i32>} : memref<1x10x128xf32, #tpu.memory_space<vmem>>, vector<1x10x128xf32>,
    return
  }
  func.func @transform_0(%arg0: i32) -> (i32, i32, i32) {
    %c0_i32 = arith.constant 0 : i32
    %c0_i32_0 = arith.constant 0 : i32
    %c0_i32_1 = arith.constant 0 : i32
    return %arg0, %c0_i32, %c0_i32_0 : i32, i32, i32
  }
  func.func @transform_1(%arg0: i32) -> (i32, i32) {
    %c0_i32 = arith.constant 0 : i32
    %c0_i32_0 = arith.constant 0 : i32
    %c0_i32_1 = arith.constant 0 : i32
    return %c0_i32, %c0_i32_0 : i32, i32
  }
  func.func @transform_2(%arg0: i32) -> (i32, i32) {
    %c0_i32 = arith.constant 0 : i32
    %c0_i32_0 = arith.constant 0 : i32
    %c0_i32_1 = arith.constant 0 : i32
    return %c0_i32, %c0_i32_0 : i32, i32
  }
  func.func @transform_3(%arg0: i32) -> (i32, i32) {
    %c0_i32 = arith.constant 0 : i32
    %c0_i32_0 = arith.constant 0 : i32
    %c0_i32_1 = arith.constant 0 : i32
    return %c0_i32, %c0_i32_0 : i32, i32
  }
  func.func @transform_4(%arg0: i32) -> (i32, i32, i32) {
    %c0_i32 = arith.constant 0 : i32
    %c0_i32_0 = arith.constant 0 : i32
    %c0_i32_1 = arith.constant 0 : i32
    %c0_i32_2 = arith.constant 0 : i32
    return %c0_i32, %c0_i32_0, %c0_i32_1 : i32, i32, i32
  }
  func.func @transform_5(%arg0: i32) -> (i32, i32) {
    %c0_i32 = arith.constant 0 : i32
    %c0_i32_0 = arith.constant 0 : i32
    %c0_i32_1 = arith.constant 0 : i32
    return %c0_i32, %c0_i32_0 : i32, i32
  }
  func.func @transform_6(%arg0: i32) -> (i32, i32) {
    %c0_i32 = arith.constant 0 : i32
    %c0_i32_0 = arith.constant 0 : i32
    %c0_i32_1 = arith.constant 0 : i32
    return %c0_i32, %c0_i32_0 : i32, i32
  }
  func.func @transform_7(%arg0: i32) -> (i32, i32, i32) {
    %c0_i32 = arith.constant 0 : i32
    %c0_i32_0 = arith.constant 0 : i32
    %c0_i32_1 = arith.constant 0 : i32
    %c0_i32_2 = arith.constant 0 : i32
    return %c0_i32, %c0_i32_0, %c0_i32_1 : i32, i32, i32
  }
  func.func @transform_8(%arg0: i32) -> (i32, i32) {
    %c0_i32 = arith.constant 0 : i32
    %c0_i32_0 = arith.constant 0 : i32
    %c0_i32_1 = arith.constant 0 : i32
    return %c0_i32, %c0_i32_0 : i32, i32
  }
  func.func @transform_9(%arg0: i32) -> (i32, i32) {
    %c0_i32 = arith.constant 0 : i32
    %c0_i32_0 = arith.constant 0 : i32
    %c0_i32_1 = arith.constant 0 : i32
    return %c0_i32, %c0_i32_0 : i32, i32
  }
  func.func @transform_10(%arg0: i32) -> (i32, i32) {
    %c0_i32 = arith.constant 0 : i32
    %c0_i32_0 = arith.constant 0 : i32
    %c0_i32_1 = arith.constant 0 : i32
    return %c0_i32, %c0_i32_0 : i32, i32
  }
  func.func @transform_11(%arg0: i32) -> (i32, i32, i32) {
    %c0_i32 = arith.constant 0 : i32
    %c0_i32_0 = arith.constant 0 : i32
    %c0_i32_1 = arith.constant 0 : i32
    return %arg0, %c0_i32, %c0_i32_0 : i32, i32, i32
  }
}

</mosaic_0001>

<llo_original>
// kernel: cnn_forward.1
$region0: #{cnn_forward.1}
  #allocation0 [shape = 'u32[]', space=smem, size = 0x4, offset = 0x4, fixed_abs, tag = 'smem constant byte address 0x4 - core index']
  #allocation1 [shape = 'u32[144,128]{1,0:T(1,128)}', space=vmem, size = 0x12000, scoped, tag = 'internal scratch']
  %s0 = inlined_call_operand.vmem [shape: f32[2,65,32], index: 0, kind: input, shape index: {}]
  %s1 = inlined_call_operand.vmem [shape: f32[32,64], index: 1, kind: input, shape index: {}]
  %s2 = inlined_call_operand.vmem [shape: f32[1,64], index: 2, kind: input, shape index: {}]
  %s3 = inlined_call_operand.vmem [shape: f32[1,64], index: 3, kind: input, shape index: {}]
  %s4 = inlined_call_operand.vmem [shape: f32[4,128,64], index: 4, kind: input, shape index: {}]
  %s5 = inlined_call_operand.vmem [shape: f32[1,64], index: 5, kind: input, shape index: {}]
  %s6 = inlined_call_operand.vmem [shape: f32[1,64], index: 6, kind: input, shape index: {}]
  %s7 = inlined_call_operand.vmem [shape: f32[4,128,128], index: 7, kind: input, shape index: {}]
  %s8 = inlined_call_operand.vmem [shape: f32[1,128], index: 8, kind: input, shape index: {}]
  %s9 = inlined_call_operand.vmem [shape: f32[1,128], index: 9, kind: input, shape index: {}]
  %s10 = inlined_call_operand.vmem [shape: f32[10,10], index: 10, kind: input, shape index: {}]
  %s11 = inlined_call_operand.vmem [shape: f32[2,10,128], index: 11, kind: output, shape index: {}]
  %s12 = sld [smem:[#allocation0]]
  $region77: #{cnn_forward.1} parent=0
    _
  %s14 = ssub.s32 1, %s12
  %s15 = scalar_select 0, %s14, %s12
  loop: start=0, step=1, limit=4
  $region2: #{cnn_forward.1} parent=0 // loop_pre_header
    _
  $region3: #{cnn_forward.1} parent=0 // loop_header
    %s17 = sphi 0, %s21
    %p18 = scmp.ge.s32.totalorder %s17, 4
    %s27 = sphi 0, %s29
    %s30 = sphi 0, %s27
    %s31 = sphi 0, %s30
    %s47 = sphi 0, %s31
    %s51 = sphi 0, %s51
    %s53 = sphi 0, %s51
    %s54 = sphi 0, %s53
    %s68 = sphi 0, %s54
    %s72 = sphi 0, %s72
    %s74 = sphi 0, %s72
    %s75 = sphi 0, %s74
    %s89 = sphi 0, %s75
    %s93 = sphi 0, %s93
    %s95 = sphi 0, %s93
    %s96 = sphi 0, %s95
    %s110 = sphi 0, %s96
    %s114 = sphi 0, %s114
    %s116 = sphi 0, %s114
    %s117 = sphi 0, %s116
    %s131 = sphi 0, %s117
    %s135 = sphi 0, %s135
    %s137 = sphi 0, %s135
    %s138 = sphi 0, %s137
    %s152 = sphi 0, %s138
    %s156 = sphi 0, %s156
    %s158 = sphi 0, %s156
    %s159 = sphi 0, %s158
    %s173 = sphi 0, %s159
    %s177 = sphi 0, %s177
    %s179 = sphi 0, %s177
    %s180 = sphi 0, %s179
    %s194 = sphi 0, %s180
    %s198 = sphi 0, %s198
    %s200 = sphi 0, %s198
    %s201 = sphi 0, %s200
    %s215 = sphi 0, %s201
    %s219 = sphi 0, %s219
    %s221 = sphi 0, %s219
    %s222 = sphi 0, %s221
    %s236 = sphi 0, %s222
    %s240 = sphi 0, %s240
    %s242 = sphi 0, %s240
    %s243 = sphi 0, %s242
    %s257 = sphi 0, %s243
    %s263 = sphi 0, %s265
    %s266 = sphi 0, %s263
    %s267 = sphi 0, %s266
    %s283 = sphi 0, %s267
  $region4: #{cnn_forward.1} parent=0 // loop_header_branch
    %20 = sbr.rel (%p18) target = $region8
  $region5: #{cnn_forward.1} parent=0 // loop_body
    %s22 = ssub.s32 %s17, 1
    %s23 = ssub.s32 %s17, 2
    %s24 = sadd.s32 %s17, 1
    %s25 = ssub.s32 %s17, %s24
    %p26 = scmp.eq.s32.totalorder %s25, 0
    %s28 = sadd.s32 %s27, 1
    %s29 = scalar_select %p26, %s27, %s28
    %p32 = pneg %p26
    %p33 = scmp.eq.s32.totalorder %s17, 1
    %p34 = por %p32, %p33
    %p35 = scmp.ne.s32.totalorder %s27, %s30
    %p36 = scmp.eq.s32.totalorder %s17, 0
    %p37 = por %p35, %p36
    %p38 = scmp.ne.s32.totalorder %s27, %s30
    %p39 = scmp.eq.s32.totalorder %s22, 1
    %p40 = por %p38, %p39
    %p41 = scmp.ne.s32.totalorder %s30, %s31
    %p42 = scmp.eq.s32.totalorder %s22, 0
    %p43 = por %p41, %p42
    %p44 = scmp.ne.s32.totalorder %s30, %s31
    %p45 = scmp.eq.s32.totalorder %s23, 1
    %p46 = por %p44, %p45
    %p48 = scmp.ne.s32.totalorder %s31, %s47
    %p49 = scmp.eq.s32.totalorder %s23, 0
    %p50 = por %p48, %p49
    %s52 = sadd.s32 %s51, 1
    %p55 = scmp.eq.s32.totalorder %s17, 1
    %p56 = scmp.ne.s32.totalorder %s51, %s53
    %p57 = scmp.eq.s32.totalorder %s17, 0
    %p58 = por %p56, %p57
    %p59 = scmp.ne.s32.totalorder %s51, %s53
    %p60 = scmp.eq.s32.totalorder %s22, 1
    %p61 = por %p59, %p60
    %p62 = scmp.ne.s32.totalorder %s53, %s54
    %p63 = scmp.eq.s32.totalorder %s22, 0
    %p64 = por %p62, %p63
    %p65 = scmp.ne.s32.totalorder %s53, %s54
    %p66 = scmp.eq.s32.totalorder %s23, 1
    %p67 = por %p65, %p66
    %p69 = scmp.ne.s32.totalorder %s54, %s68
    %p70 = scmp.eq.s32.totalorder %s23, 0
    %p71 = por %p69, %p70
    %s73 = sadd.s32 %s72, 1
    %p76 = scmp.eq.s32.totalorder %s17, 1
    %p77 = scmp.ne.s32.totalorder %s72, %s74
    %p78 = scmp.eq.s32.totalorder %s17, 0
    %p79 = por %p77, %p78
    %p80 = scmp.ne.s32.totalorder %s72, %s74
    %p81 = scmp.eq.s32.totalorder %s22, 1
    %p82 = por %p80, %p81
    %p83 = scmp.ne.s32.totalorder %s74, %s75
    %p84 = scmp.eq.s32.totalorder %s22, 0
    %p85 = por %p83, %p84
    %p86 = scmp.ne.s32.totalorder %s74, %s75
    %p87 = scmp.eq.s32.totalorder %s23, 1
    %p88 = por %p86, %p87
    %p90 = scmp.ne.s32.totalorder %s75, %s89
    %p91 = scmp.eq.s32.totalorder %s23, 0
    %p92 = por %p90, %p91
    %s94 = sadd.s32 %s93, 1
    %p97 = scmp.eq.s32.totalorder %s17, 1
    %p98 = scmp.ne.s32.totalorder %s93, %s95
    %p99 = scmp.eq.s32.totalorder %s17, 0
    %p100 = por %p98, %p99
    %p101 = scmp.ne.s32.totalorder %s93, %s95
    %p102 = scmp.eq.s32.totalorder %s22, 1
    %p103 = por %p101, %p102
    %p104 = scmp.ne.s32.totalorder %s95, %s96
    %p105 = scmp.eq.s32.totalorder %s22, 0
    %p106 = por %p104, %p105
    %p107 = scmp.ne.s32.totalorder %s95, %s96
    %p108 = scmp.eq.s32.totalorder %s23, 1
    %p109 = por %p107, %p108
    %p111 = scmp.ne.s32.totalorder %s96, %s110
    %p112 = scmp.eq.s32.totalorder %s23, 0
    %p113 = por %p111, %p112
    %s115 = sadd.s32 %s114, 1
    %p118 = scmp.eq.s32.totalorder %s17, 1
    %p119 = scmp.ne.s32.totalorder %s114, %s116
    %p120 = scmp.eq.s32.totalorder %s17, 0
    %p121 = por %p119, %p120
    %p122 = scmp.ne.s32.totalorder %s114, %s116
    %p123 = scmp.eq.s32.totalorder %s22, 1
    %p124 = por %p122, %p123
    %p125 = scmp.ne.s32.totalorder %s116, %s117
    %p126 = scmp.eq.s32.totalorder %s22, 0
    %p127 = por %p125, %p126
    %p128 = scmp.ne.s32.totalorder %s116, %s117
    %p129 = scmp.eq.s32.totalorder %s23, 1
    %p130 = por %p128, %p129
    %p132 = scmp.ne.s32.totalorder %s117, %s131
    %p133 = scmp.eq.s32.totalorder %s23, 0
    %p134 = por %p132, %p133
    %s136 = sadd.s32 %s135, 1
    %p139 = scmp.eq.s32.totalorder %s17, 1
    %p140 = scmp.ne.s32.totalorder %s135, %s137
    %p141 = scmp.eq.s32.totalorder %s17, 0
    %p142 = por %p140, %p141
    %p143 = scmp.ne.s32.totalorder %s135, %s137
    %p144 = scmp.eq.s32.totalorder %s22, 1
    %p145 = por %p143, %p144
    %p146 = scmp.ne.s32.totalorder %s137, %s138
    %p147 = scmp.eq.s32.totalorder %s22, 0
    %p148 = por %p146, %p147
    %p149 = scmp.ne.s32.totalorder %s137, %s138
    %p150 = scmp.eq.s32.totalorder %s23, 1
    %p151 = por %p149, %p150
    %p153 = scmp.ne.s32.totalorder %s138, %s152
    %p154 = scmp.eq.s32.totalorder %s23, 0
    %p155 = por %p153, %p154
    %s157 = sadd.s32 %s156, 1
    %p160 = scmp.eq.s32.totalorder %s17, 1
    %p161 = scmp.ne.s32.totalorder %s156, %s158
    %p162 = scmp.eq.s32.totalorder %s17, 0
    %p163 = por %p161, %p162
    %p164 = scmp.ne.s32.totalorder %s156, %s158
    %p165 = scmp.eq.s32.totalorder %s22, 1
    %p166 = por %p164, %p165
    %p167 = scmp.ne.s32.totalorder %s158, %s159
    %p168 = scmp.eq.s32.totalorder %s22, 0
    %p169 = por %p167, %p168
    %p170 = scmp.ne.s32.totalorder %s158, %s159
    %p171 = scmp.eq.s32.totalorder %s23, 1
    %p172 = por %p170, %p171
    %p174 = scmp.ne.s32.totalorder %s159, %s173
    %p175 = scmp.eq.s32.totalorder %s23, 0
    %p176 = por %p174, %p175
    %s178 = sadd.s32 %s177, 1
    %p181 = scmp.eq.s32.totalorder %s17, 1
    %p182 = scmp.ne.s32.totalorder %s177, %s179
    %p183 = scmp.eq.s32.totalorder %s17, 0
    %p184 = por %p182, %p183
    %p185 = scmp.ne.s32.totalorder %s177, %s179
    %p186 = scmp.eq.s32.totalorder %s22, 1
    %p187 = por %p185, %p186
    %p188 = scmp.ne.s32.totalorder %s179, %s180
    %p189 = scmp.eq.s32.totalorder %s22, 0
    %p190 = por %p188, %p189
    %p191 = scmp.ne.s32.totalorder %s179, %s180
    %p192 = scmp.eq.s32.totalorder %s23, 1
    %p193 = por %p191, %p192
    %p195 = scmp.ne.s32.totalorder %s180, %s194
    %p196 = scmp.eq.s32.totalorder %s23, 0
    %p197 = por %p195, %p196
    %s199 = sadd.s32 %s198, 1
    %p202 = scmp.eq.s32.totalorder %s17, 1
    %p203 = scmp.ne.s32.totalorder %s198, %s200
    %p204 = scmp.eq.s32.totalorder %s17, 0
    %p205 = por %p203, %p204
    %p206 = scmp.ne.s32.totalorder %s198, %s200
    %p207 = scmp.eq.s32.totalorder %s22, 1
    %p208 = por %p206, %p207
    %p209 = scmp.ne.s32.totalorder %s200, %s201
    %p210 = scmp.eq.s32.totalorder %s22, 0
    %p211 = por %p209, %p210
    %p212 = scmp.ne.s32.totalorder %s200, %s201
    %p213 = scmp.eq.s32.totalorder %s23, 1
    %p214 = por %p212, %p213
    %p216 = scmp.ne.s32.totalorder %s201, %s215
    %p217 = scmp.eq.s32.totalorder %s23, 0
    %p218 = por %p216, %p217
    %s220 = sadd.s32 %s219, 1
    %p223 = scmp.eq.s32.totalorder %s17, 1
    %p224 = scmp.ne.s32.totalorder %s219, %s221
    %p225 = scmp.eq.s32.totalorder %s17, 0
    %p226 = por %p224, %p225
    %p227 = scmp.ne.s32.totalorder %s219, %s221
    %p228 = scmp.eq.s32.totalorder %s22, 1
    %p229 = por %p227, %p228
    %p230 = scmp.ne.s32.totalorder %s221, %s222
    %p231 = scmp.eq.s32.totalorder %s22, 0
    %p232 = por %p230, %p231
    %p233 = scmp.ne.s32.totalorder %s221, %s222
    %p234 = scmp.eq.s32.totalorder %s23, 1
    %p235 = por %p233, %p234
    %p237 = scmp.ne.s32.totalorder %s222, %s236
    %p238 = scmp.eq.s32.totalorder %s23, 0
    %p239 = por %p237, %p238
    %s241 = sadd.s32 %s240, 1
    %p244 = scmp.eq.s32.totalorder %s17, 1
    %p245 = scmp.ne.s32.totalorder %s240, %s242
    %p246 = scmp.eq.s32.totalorder %s17, 0
    %p247 = por %p245, %p246
    %p248 = scmp.ne.s32.totalorder %s240, %s242
    %p249 = scmp.eq.s32.totalorder %s22, 1
    %p250 = por %p248, %p249
    %p251 = scmp.ne.s32.totalorder %s242, %s243
    %p252 = scmp.eq.s32.totalorder %s22, 0
    %p253 = por %p251, %p252
    %p254 = scmp.ne.s32.totalorder %s242, %s243
    %p255 = scmp.eq.s32.totalorder %s23, 1
    %p256 = por %p254, %p255
    %p258 = scmp.ne.s32.totalorder %s243, %s257
    %p259 = scmp.eq.s32.totalorder %s23, 0
    %p260 = por %p258, %p259
    %s261 = ssub.s32 %s17, %s24
    %p262 = scmp.eq.s32.totalorder %s261, 0
    %s264 = sadd.s32 %s263, 1
    %s265 = scalar_select %p262, %s263, %s264
    %p268 = pneg %p262
    %p269 = scmp.eq.s32.totalorder %s17, 1
    %p270 = por %p268, %p269
    %p271 = scmp.ne.s32.totalorder %s263, %s266
    %p272 = scmp.eq.s32.totalorder %s17, 0
    %p273 = por %p271, %p272
    %p274 = scmp.ne.s32.totalorder %s263, %s266
    %p275 = scmp.eq.s32.totalorder %s22, 1
    %p276 = por %p274, %p275
    %p277 = scmp.ne.s32.totalorder %s266, %s267
    %p278 = scmp.eq.s32.totalorder %s22, 0
    %p279 = por %p277, %p278
    %p280 = scmp.ne.s32.totalorder %s266, %s267
    %p281 = scmp.eq.s32.totalorder %s23, 1
    %p282 = por %p280, %p281
    %p284 = scmp.ne.s32.totalorder %s267, %s283
    %p285 = scmp.eq.s32.totalorder %s23, 0
    %p286 = por %p284, %p285
    %p287 = scmp.le.s32.totalorder 1, %s17
    %p288 = scmp.lt.s32.totalorder %s17, 3
    %p289 = pnand %p287, %p288
    %p290 = pneg %p289
    // Predicated region
    $region9: #{cnn_forward.1} parent=5 // pred_check
      _
    $region10: #{cnn_forward.1} parent=5 // pred_check_branch
      %292 = sbr.rel (%p289) target = $region12
    $region11: #{cnn_forward.1} parent=5 // pred_region
      %s293 = ssub.s32 %s17, 1
      // Predicated region
      $region13: #{cnn_forward.1} parent=11 // pred_check
        %p294 = pneg %p64
      $region14: #{cnn_forward.1} parent=11 // pred_check_branch
        %296 = sbr.rel (%p294) target = $region16
      $region15: #{cnn_forward.1} parent=11 // pred_region
        _
      $region16: #{cnn_forward.1} parent=11 // pred_fallthru
        _
      // Predicated region
      $region17: #{cnn_forward.1} parent=11 // pred_check
        %p297 = pneg %p85
      $region18: #{cnn_forward.1} parent=11 // pred_check_branch
        %299 = sbr.rel (%p297) target = $region20
      $region19: #{cnn_forward.1} parent=11 // pred_region
        _
      $region20: #{cnn_forward.1} parent=11 // pred_fallthru
        _
      // Predicated region
      $region21: #{cnn_forward.1} parent=11 // pred_check
        %p300 = pneg %p106
      $region22: #{cnn_forward.1} parent=11 // pred_check_branch
        %302 = sbr.rel (%p300) target = $region24
      $region23: #{cnn_forward.1} parent=11 // pred_region
        _
      $region24: #{cnn_forward.1} parent=11 // pred_fallthru
        _
      // Predicated region
      $region25: #{cnn_forward.1} parent=11 // pred_check
        %p303 = pneg %p127
      $region26: #{cnn_forward.1} parent=11 // pred_check_branch
        %305 = sbr.rel (%p303) target = $region28
      $region27: #{cnn_forward.1} parent=11 // pred_region
        _
      $region28: #{cnn_forward.1} parent=11 // pred_fallthru
        _
      // Predicated region
      $region29: #{cnn_forward.1} parent=11 // pred_check
        %p306 = pneg %p148
      $region30: #{cnn_forward.1} parent=11 // pred_check_branch
        %308 = sbr.rel (%p306) target = $region32
      $region31: #{cnn_forward.1} parent=11 // pred_region
        _
      $region32: #{cnn_forward.1} parent=11 // pred_fallthru
        _
      // Predicated region
      $region33: #{cnn_forward.1} parent=11 // pred_check
        %p309 = pneg %p169
      $region34: #{cnn_forward.1} parent=11 // pred_check_branch
        %311 = sbr.rel (%p309) target = $region36
      $region35: #{cnn_forward.1} parent=11 // pred_region
        _
      $region36: #{cnn_forward.1} parent=11 // pred_fallthru
        _
      // Predicated region
      $region37: #{cnn_forward.1} parent=11 // pred_check
        %p312 = pneg %p190
      $region38: #{cnn_forward.1} parent=11 // pred_check_branch
        %314 = sbr.rel (%p312) target = $region40
      $region39: #{cnn_forward.1} parent=11 // pred_region
        _
      $region40: #{cnn_forward.1} parent=11 // pred_fallthru
        _
      // Predicated region
      $region41: #{cnn_forward.1} parent=11 // pred_check
        %p315 = pneg %p211
      $region42: #{cnn_forward.1} parent=11 // pred_check_branch
        %317 = sbr.rel (%p315) target = $region44
      $region43: #{cnn_forward.1} parent=11 // pred_region
        _
      $region44: #{cnn_forward.1} parent=11 // pred_fallthru
        _
      // Predicated region
      $region45: #{cnn_forward.1} parent=11 // pred_check
        %p318 = pneg %p232
      $region46: #{cnn_forward.1} parent=11 // pred_check_branch
        %320 = sbr.rel (%p318) target = $region48
      $region47: #{cnn_forward.1} parent=11 // pred_region
        _
      $region48: #{cnn_forward.1} parent=11 // pred_fallthru
        _
      // Predicated region
      $region49: #{cnn_forward.1} parent=11 // pred_check
        %p321 = pneg %p253
      $region50: #{cnn_forward.1} parent=11 // pred_check_branch
        %323 = sbr.rel (%p321) target = $region52
      $region51: #{cnn_forward.1} parent=11 // pred_region
        _
      $region52: #{cnn_forward.1} parent=11 // pred_fallthru
        _
    $region12: #{cnn_forward.1} parent=5 // pred_fallthru
      _
    %p324 = scmp.lt.s32.totalorder %s17, 2
    // Predicated region
    $region53: #{cnn_forward.1} parent=5 // pred_check
      %p325 = pneg %p324
    $region54: #{cnn_forward.1} parent=5 // pred_check_branch
      %327 = sbr.rel (%p325) target = $region56
    $region55: #{cnn_forward.1} parent=5 // pred_region
      // Predicated region
      $region57: #{cnn_forward.1} parent=55 // pred_check
        %p328 = pneg %p37
      $region58: #{cnn_forward.1} parent=55 // pred_check_branch
        %330 = sbr.rel (%p328) target = $region60
      $region59: #{cnn_forward.1} parent=55 // pred_region
        %p331 = scmp.lt.s32.totalorder %s17, 1
        %s332 = scalar_select %p331, %s17, 1
        %s333 = smul.addr %s332, 9
        %s334 = smul.addr %s333, 8
        %s335 = scalar_lea.vmem %s0, %s334
      $region60: #{cnn_forward.1} parent=55 // pred_fallthru
        _
    $region56: #{cnn_forward.1} parent=5 // pred_fallthru
      _
    %p336 = scmp.le.s32.totalorder 1, %s17
    %p337 = scmp.lt.s32.totalorder %s17, 3
    %p338 = pnand %p336, %p337
    %p339 = pneg %p338
    // Predicated region
    $region61: #{cnn_forward.1} parent=5 // pred_check
      _
    $region62: #{cnn_forward.1} parent=5 // pred_check_branch
      %341 = sbr.rel (%p338) target = $region64
    $region63: #{cnn_forward.1} parent=5 // pred_region
      %s342 = ssub.s32 %s17, 1
      %p343 = scmp.lt.s32.totalorder %s22, 1
      %s344 = scalar_select %p343, %s22, 1
      %s345 = smul.addr %s344, 9
      %s346 = smul.addr %s345, 8
      %s347 = scalar_lea.vmem %s0, %s346
      %p348 = pneg %p43
      %p349 = pneg %p40
      %p350 = pneg %p64
      %p351 = pneg %p61
      %p352 = pneg %p85
      %p353 = pneg %p82
      %p354 = pneg %p106
      %p355 = pneg %p103
      %p356 = pneg %p127
      %p357 = pneg %p124
      %p358 = pneg %p148
      %p359 = pneg %p145
      %p360 = pneg %p169
      %p361 = pneg %p166
      %p362 = pneg %p190
      %p363 = pneg %p187
      %p364 = pneg %p211
      %p365 = pneg %p208
      %p366 = pneg %p232
      %p367 = pneg %p229
      %p368 = pneg %p253
      %p369 = pneg %p250
      %p370 = pneg %p279
      %p371 = pneg %p276
      %p372 = scmp.lt.s32.totalorder %s22, 1
      %s373 = scalar_select %p372, %s22, 1
      %s374 = smul.addr %s373, 2
      %s375 = smul.addr %s374, 8
      %s376 = scalar_lea.vmem %s11, %s375
      %p377 = scmp.lt.s32.totalorder %s22, 1
      %s378 = scalar_select %p377, %s22, 1
      %s379 = smul.addr %s378, 9
      %s380 = smul.addr %s379, 8
      %s381 = scalar_lea.vmem %s0, %s380
      %p382 = scmp.lt.s32.totalorder %s22, 1
      %s383 = scalar_select %p382, %s22, 1
      %s384 = smul.addr %s383, 2
      %s385 = smul.addr %s384, 8
      %s386 = scalar_lea.vmem %s11, %s385
      %v387 = vld [vmem:[%s381] sm:$0xff]
      %v388 = vld [vmem:[%s381 + $0x8] sm:$0xff]
      %v389 = vld [vmem:[%s381 + $0x10] sm:$0xff]
      %v390 = vld [vmem:[%s381 + $0x18] sm:$0xff]
      %v391 = vld [vmem:[%s381 + $0x20] sm:$0xff]
      %v392 = vld [vmem:[%s381 + $0x28] sm:$0xff]
      %v393 = vld [vmem:[%s381 + $0x30] sm:$0xff]
      %v394 = vld [vmem:[%s381 + $0x38] sm:$0xff]
      %v395 = vld [vmem:[%s381 + $0x40] sm:$0x1]
      %v396 = vld [vmem:[%s1] sm:$0xff]
      %v397 = vld [vmem:[%s1 + $0x8] sm:$0xff]
      %v398 = vld [vmem:[%s1 + $0x10] sm:$0xff]
      %v399 = vld [vmem:[%s1 + $0x18] sm:$0xff]
      %vm400 = vcmask 261120
      %v402 = vsel %vm400, %v387, 0
      %v405 = vsel %vm400, %v388, 0
      %v408 = vsel %vm400, %v389, 0
      %v411 = vsel %vm400, %v390, 0
      %v414 = vsel %vm400, %v391, 0
      %v417 = vsel %vm400, %v392, 0
      %v420 = vsel %vm400, %v393, 0
      %v423 = vsel %vm400, %v394, 0
      %v426 = vsel %vm400, %v395, 0
      %428 = vmatprep.subr.mxu0 0.0
      %429 = vmatpush1.msra.mxu0 0.0
      %430 = vmatprep.subr.mxu0 0.0
      %431 = vmatpush1.msra.mxu0 0.0
      %432 = vmatprep.subr.mxu0 0.0
      %433 = vmatpush1.msra.mxu0 0.0
      %434 = vmatprep.subr.mxu0 0.0
      %435 = vmatpush1.msra.mxu0 0.0
      %436 = vmatprep.subr.mxu0 0.0
      %437 = vmatpush1.msra.mxu0 0.0
      %438 = vmatprep.subr.mxu0 0.0
      %439 = vmatpush1.msra.mxu0 0.0
      %440 = vmatprep.subr.mxu0 0.0
      %441 = vmatpush1.msra.mxu0 0.0
      %442 = vmatprep.subr.mxu0 0.0
      %443 = vmatpush1.msra.mxu0 0.0
      %444 = vmatprep.subr.mxu0 0.0
      %445 = vmatpush1.msra.mxu0 0.0
      %446 = vmatprep.subr.mxu0 0.0
      %447 = vmatpush1.msra.mxu0 0.0
      %448 = vmatprep.subr.mxu0 0.0
      %449 = vmatpush1.msra.mxu0 0.0
      %450 = vmatprep.subr.mxu0 0.0
      %451 = vmatpush1.msra.mxu0 0.0
      %452 = vmatprep.subr.mxu0 0.0
      %453 = vmatpush1.msra.mxu0 %v399
      %454 = vmatprep.subr.mxu0 0.0
      %455 = vmatpush1.msra.mxu0 %v398
      %456 = vmatprep.subr.mxu0 0.0
      %457 = vmatpush1.msra.mxu0 %v397
      %458 = vmatprep.subr.mxu0 0.0
      %459 = vmatpush1.msra.mxu0 %v396
      %460 = vmatprep.subr.mxu0 0.0
      %461 = vmatpush2.msra.mxu0 0.0
      %462 = vmatprep.subr.mxu0 0.0
      %463 = vmatpush2.msra.mxu0 0.0
      %464 = vmatprep.subr.mxu0 0.0
      %465 = vmatpush2.msra.mxu0 0.0
      %466 = vmatprep.subr.mxu0 0.0
      %467 = vmatpush2.msra.mxu0 0.0
      %468 = vmatprep.subr.mxu0 0.0
      %469 = vmatpush2.msra.mxu0 0.0
      %470 = vmatprep.subr.mxu0 0.0
      %471 = vmatpush2.msra.mxu0 0.0
      %472 = vmatprep.subr.mxu0 0.0
      %473 = vmatpush2.msra.mxu0 0.0
      %474 = vmatprep.subr.mxu0 0.0
      %475 = vmatpush2.msra.mxu0 0.0
      %476 = vmatprep.subr.mxu0 0.0
      %477 = vmatpush2.msra.mxu0 0.0
      %478 = vmatprep.subr.mxu0 0.0
      %479 = vmatpush2.msra.mxu0 0.0
      %480 = vmatprep.subr.mxu0 0.0
      %481 = vmatpush2.msra.mxu0 0.0
      %482 = vmatprep.subr.mxu0 0.0
      %483 = vmatpush2.msra.mxu0 0.0
      %484 = vmatprep.subr.mxu0 0.0
      %485 = vmatpush2.msra.mxu0 0.0
      %486 = vmatprep.subr.mxu0 0.0
      %487 = vmatpush2.msra.mxu0 0.0
      %488 = vmatprep.subr.mxu0 0.0
      %489 = vmatpush2.msra.mxu0 0.0
      %490 = vmatprep.subr.mxu0 0.0
      %491 = vmatpush2.msra.mxu0 0.0
      %492 = vmatprep.mubr.f32.mxu0 0.0
      %493 = vmatmul.mubr.f32.gmra.mxu0 %v402
      %v494 = vpop.f32.mrf.mxu0
      %v495 = vadd.f32 0.0, %v494
      %v496 = vpop.f32.mrf.mxu0
      %497 = vmatprep.mubr.f32.mxu0 0.0
      %498 = vmatmul.mubr.f32.gmra.mxu0 %v405
      %v499 = vpop.f32.mrf.mxu0
      %v500 = vadd.f32 0.0, %v499
      %v501 = vpop.f32.mrf.mxu0
      %502 = vmatprep.mubr.f32.mxu0 0.0
      %503 = vmatmul.mubr.f32.gmra.mxu0 %v408
      %v504 = vpop.f32.mrf.mxu0
      %v505 = vadd.f32 0.0, %v504
      %v506 = vpop.f32.mrf.mxu0
      %507 = vmatprep.mubr.f32.mxu0 0.0
      %508 = vmatmul.mubr.f32.gmra.mxu0 %v411
      %v509 = vpop.f32.mrf.mxu0
      %v510 = vadd.f32 0.0, %v509
      %v511 = vpop.f32.mrf.mxu0
      %512 = vmatprep.mubr.f32.mxu0 0.0
      %513 = vmatmul.mubr.f32.gmra.mxu0 %v414
      %v514 = vpop.f32.mrf.mxu0
      %v515 = vadd.f32 0.0, %v514
      %v516 = vpop.f32.mrf.mxu0
      %517 = vmatprep.mubr.f32.mxu0 0.0
      %518 = vmatmul.mubr.f32.gmra.mxu0 %v417
      %v519 = vpop.f32.mrf.mxu0
      %v520 = vadd.f32 0.0, %v519
      %v521 = vpop.f32.mrf.mxu0
      %522 = vmatprep.mubr.f32.mxu0 0.0
      %523 = vmatmul.mubr.f32.gmra.mxu0 %v420
      %v524 = vpop.f32.mrf.mxu0
      %v525 = vadd.f32 0.0, %v524
      %v526 = vpop.f32.mrf.mxu0
      %527 = vmatprep.mubr.f32.mxu0 0.0
      %528 = vmatmul.mubr.f32.gmra.mxu0 %v423
      %v529 = vpop.f32.mrf.mxu0
      %v530 = vadd.f32 0.0, %v529
      %v531 = vpop.f32.mrf.mxu0
      %532 = vmatprep.mubr.f32.mxu0 0.0
      %533 = vmatmul.mubr.f32.gmra.mxu0 %v426
      %v534 = vpop.f32.mrf.mxu0
      %v535 = vadd.f32 0.0, %v534
      %v536 = vpop.f32.mrf.mxu0
      %537 = vdwg.mxu0
      %v538 = vld [vmem:[%s2] sm:$0x1]
      %v540 = vlaneseq
      %v541 = vshrl.u32 %v540, 7
      %v542 = vsub.s32 0, %v541
      %v543 = vrot.slane %v538, %v542
      %v545 = vmul.f32 %v495, %v543
      %v546 = vmul.f32 %v500, %v543
      %v547 = vmul.f32 %v505, %v543
      %v548 = vmul.f32 %v510, %v543
      %v549 = vmul.f32 %v515, %v543
      %v550 = vmul.f32 %v520, %v543
      %v551 = vmul.f32 %v525, %v543
      %v552 = vmul.f32 %v530, %v543
      %v553 = vmul.f32 %v535, %v543
      %v554 = vld [vmem:[%s3] sm:$0x1]
      %v556 = vlaneseq
      %v557 = vshrl.u32 %v556, 7
      %v558 = vsub.s32 0, %v557
      %v559 = vrot.slane %v554, %v558
      %v561 = vadd.f32 %v545, %v559
      %v562 = vadd.f32 %v546, %v559
      %v563 = vadd.f32 %v547, %v559
      %v564 = vadd.f32 %v548, %v559
      %v565 = vadd.f32 %v549, %v559
      %v566 = vadd.f32 %v550, %v559
      %v567 = vadd.f32 %v551, %v559
      %v568 = vadd.f32 %v552, %v559
      %v569 = vadd.f32 %v553, %v559
      %v570 = vmax.f32 %v561, 0.0
      %v571 = vmax.f32 %v562, 0.0
      %v572 = vmax.f32 %v563, 0.0
      %v573 = vmax.f32 %v564, 0.0
      %v574 = vmax.f32 %v565, 0.0
      %v575 = vmax.f32 %v566, 0.0
      %v576 = vmax.f32 %v567, 0.0
      %v577 = vmax.f32 %v568, 0.0
      %v578 = vmax.f32 %v569, 0.0
      %v588 = vcombine.high %v570, %v570
      %v590 = vunpack.c.l.s4 1983009808
      %v591 = vunpack.c.0.s8 %v590
      %v592 = vlaneseq
      %v593 = vshrl.u32 %v592, 7
      %v594 = vsub.s32 %v591, %v593
      %v595 = vrot.slane %v570, %v594
      %v597 = vunpack.c.l.s4 1983009808
      %v598 = vunpack.c.0.s8 %v597
      %v599 = vlaneseq
      %v600 = vshrl.u32 %v599, 7
      %v601 = vsub.s32 %v598, %v600
      %v602 = vrot.slane %v588, %v601
      %v603 = vcombine.high %v595, %v595
      %v604 = vcombine.high %v602, %v602
      %v605 = vcombine.high %v571, %v571
      %v607 = vunpack.c.l.s4 1983009808
      %v608 = vunpack.c.0.s8 %v607
      %v609 = vlaneseq
      %v610 = vshrl.u32 %v609, 7
      %v611 = vsub.s32 %v608, %v610
      %v612 = vrot.slane %v571, %v611
      %v614 = vunpack.c.l.s4 1983009808
      %v615 = vunpack.c.0.s8 %v614
      %v616 = vlaneseq
      %v617 = vshrl.u32 %v616, 7
      %v618 = vsub.s32 %v615, %v617
      %v619 = vrot.slane %v605, %v618
      %v620 = vcombine.high %v612, %v612
      %v621 = vcombine.high %v619, %v619
      %v622 = vcombine.high %v572, %v572
      %v624 = vunpack.c.l.s4 1983009808
      %v625 = vunpack.c.0.s8 %v624
      %v626 = vlaneseq
      %v627 = vshrl.u32 %v626, 7
      %v628 = vsub.s32 %v625, %v627
      %v629 = vrot.slane %v572, %v628
      %v631 = vunpack.c.l.s4 1983009808
      %v632 = vunpack.c.0.s8 %v631
      %v633 = vlaneseq
      %v634 = vshrl.u32 %v633, 7
      %v635 = vsub.s32 %v632, %v634
      %v636 = vrot.slane %v622, %v635
      %v637 = vcombine.high %v629, %v629
      %v638 = vcombine.high %v636, %v636
      %v639 = vcombine.high %v573, %v573
      %v641 = vunpack.c.l.s4 1983009808
      %v642 = vunpack.c.0.s8 %v641
      %v643 = vlaneseq
      %v644 = vshrl.u32 %v643, 7
      %v645 = vsub.s32 %v642, %v644
      %v646 = vrot.slane %v573, %v645
      %v648 = vunpack.c.l.s4 1983009808
      %v649 = vunpack.c.0.s8 %v648
      %v650 = vlaneseq
      %v651 = vshrl.u32 %v650, 7
      %v652 = vsub.s32 %v649, %v651
      %v653 = vrot.slane %v639, %v652
      %v654 = vcombine.high %v646, %v646
      %v655 = vcombine.high %v653, %v653
      %v656 = vcombine.high %v574, %v574
      %v658 = vunpack.c.l.s4 1983009808
      %v659 = vunpack.c.0.s8 %v658
      %v660 = vlaneseq
      %v661 = vshrl.u32 %v660, 7
      %v662 = vsub.s32 %v659, %v661
      %v663 = vrot.slane %v574, %v662
      %v665 = vunpack.c.l.s4 1983009808
      %v666 = vunpack.c.0.s8 %v665
      %v667 = vlaneseq
      %v668 = vshrl.u32 %v667, 7
      %v669 = vsub.s32 %v666, %v668
      %v670 = vrot.slane %v656, %v669
      %v671 = vcombine.high %v663, %v663
      %v672 = vcombine.high %v670, %v670
      %v673 = vcombine.high %v575, %v575
      %v675 = vunpack.c.l.s4 1983009808
      %v676 = vunpack.c.0.s8 %v675
      %v677 = vlaneseq
      %v678 = vshrl.u32 %v677, 7
      %v679 = vsub.s32 %v676, %v678
      %v680 = vrot.slane %v575, %v679
      %v682 = vunpack.c.l.s4 1983009808
      %v683 = vunpack.c.0.s8 %v682
      %v684 = vlaneseq
      %v685 = vshrl.u32 %v684, 7
      %v686 = vsub.s32 %v683, %v685
      %v687 = vrot.slane %v673, %v686
      %v688 = vcombine.high %v680, %v680
      %v689 = vcombine.high %v687, %v687
      %v690 = vcombine.high %v576, %v576
      %v692 = vunpack.c.l.s4 1983009808
      %v693 = vunpack.c.0.s8 %v692
      %v694 = vlaneseq
      %v695 = vshrl.u32 %v694, 7
      %v696 = vsub.s32 %v693, %v695
      %v697 = vrot.slane %v576, %v696
      %v699 = vunpack.c.l.s4 1983009808
      %v700 = vunpack.c.0.s8 %v699
      %v701 = vlaneseq
      %v702 = vshrl.u32 %v701, 7
      %v703 = vsub.s32 %v700, %v702
      %v704 = vrot.slane %v690, %v703
      %v705 = vcombine.high %v697, %v697
      %v706 = vcombine.high %v704, %v704
      %v707 = vcombine.high %v577, %v577
      %v709 = vunpack.c.l.s4 1983009808
      %v710 = vunpack.c.0.s8 %v709
      %v711 = vlaneseq
      %v712 = vshrl.u32 %v711, 7
      %v713 = vsub.s32 %v710, %v712
      %v714 = vrot.slane %v577, %v713
      %v716 = vunpack.c.l.s4 1983009808
      %v717 = vunpack.c.0.s8 %v716
      %v718 = vlaneseq
      %v719 = vshrl.u32 %v718, 7
      %v720 = vsub.s32 %v717, %v719
      %v721 = vrot.slane %v707, %v720
      %v722 = vcombine.high %v714, %v714
      %v723 = vcombine.high %v721, %v721
      %v725 = vunpack.c.l.s4 1983009808
      %v726 = vunpack.c.0.s8 %v725
      %v727 = vlaneseq
      %v728 = vshrl.u32 %v727, 7
      %v729 = vsub.s32 %v726, %v728
      %v730 = vrot.slane %v578, %v729
      %vm731 = vcmask 1040384
      %vm732 = vcmask 1042434
      %vm733 = vmor %vm731, %vm732
      %vm734 = vcmask 1044484
      %vm735 = vmor %vm733, %vm734
      %vm736 = vcmask 1046534
      %vm737 = vmor %vm735, %vm736
      %v738 = vrot.slane %v595, 7
      %v739 = vrot.slane %v738, 2
      %v740 = vrot.slane %v603, 7
      %v741 = vsel %vm737, %v739, %v740
      %v742 = vrot.slane %v740, 2
      %v743 = vrot.slane %v602, 7
      %v744 = vsel %vm737, %v742, %v743
      %v745 = vrot.slane %v743, 2
      %v746 = vrot.slane %v604, 7
      %v747 = vsel %vm737, %v745, %v746
      %v748 = vrot.slane %v746, 2
      %v749 = vrot.slane %v612, 7
      %v750 = vsel %vm737, %v748, %v749
      %v751 = vrot.slane %v749, 2
      %v752 = vrot.slane %v620, 7
      %v753 = vsel %vm737, %v751, %v752
      %v754 = vrot.slane %v752, 2
      %v755 = vrot.slane %v619, 7
      %v756 = vsel %vm737, %v754, %v755
      %v757 = vrot.slane %v755, 2
      %v758 = vrot.slane %v621, 7
      %v759 = vsel %vm737, %v757, %v758
      %v760 = vrot.slane %v758, 2
      %v761 = vrot.slane %v629, 7
      %v762 = vsel %vm737, %v760, %v761
      %v763 = vrot.slane %v761, 2
      %v764 = vrot.slane %v637, 7
      %v765 = vsel %vm737, %v763, %v764
      %v766 = vrot.slane %v764, 2
      %v767 = vrot.slane %v636, 7
      %v768 = vsel %vm737, %v766, %v767
      %v769 = vrot.slane %v767, 2
      %v770 = vrot.slane %v638, 7
      %v771 = vsel %vm737, %v769, %v770
      %v772 = vrot.slane %v770, 2
      %v773 = vrot.slane %v646, 7
      %v774 = vsel %vm737, %v772, %v773
      %v775 = vrot.slane %v773, 2
      %v776 = vrot.slane %v654, 7
      %v777 = vsel %vm737, %v775, %v776
      %v778 = vrot.slane %v776, 2
      %v779 = vrot.slane %v653, 7
      %v780 = vsel %vm737, %v778, %v779
      %v781 = vrot.slane %v779, 2
      %v782 = vrot.slane %v655, 7
      %v783 = vsel %vm737, %v781, %v782
      %v784 = vrot.slane %v782, 2
      %v785 = vrot.slane %v663, 7
      %v786 = vsel %vm737, %v784, %v785
      %v787 = vrot.slane %v785, 2
      %v788 = vrot.slane %v671, 7
      %v789 = vsel %vm737, %v787, %v788
      %v790 = vrot.slane %v788, 2
      %v791 = vrot.slane %v670, 7
      %v792 = vsel %vm737, %v790, %v791
      %v793 = vrot.slane %v791, 2
      %v794 = vrot.slane %v672, 7
      %v795 = vsel %vm737, %v793, %v794
      %v796 = vrot.slane %v794, 2
      %v797 = vrot.slane %v680, 7
      %v798 = vsel %vm737, %v796, %v797
      %v799 = vrot.slane %v797, 2
      %v800 = vrot.slane %v688, 7
      %v801 = vsel %vm737, %v799, %v800
      %v802 = vrot.slane %v800, 2
      %v803 = vrot.slane %v687, 7
      %v804 = vsel %vm737, %v802, %v803
      %v805 = vrot.slane %v803, 2
      %v806 = vrot.slane %v689, 7
      %v807 = vsel %vm737, %v805, %v806
      %v808 = vrot.slane %v806, 2
      %v809 = vrot.slane %v697, 7
      %v810 = vsel %vm737, %v808, %v809
      %v811 = vrot.slane %v809, 2
      %v812 = vrot.slane %v705, 7
      %v813 = vsel %vm737, %v811, %v812
      %v814 = vrot.slane %v812, 2
      %v815 = vrot.slane %v704, 7
      %v816 = vsel %vm737, %v814, %v815
      %v817 = vrot.slane %v815, 2
      %v818 = vrot.slane %v706, 7
      %v819 = vsel %vm737, %v817, %v818
      %v820 = vrot.slane %v818, 2
      %v821 = vrot.slane %v714, 7
      %v822 = vsel %vm737, %v820, %v821
      %v823 = vrot.slane %v821, 2
      %v824 = vrot.slane %v722, 7
      %v825 = vsel %vm737, %v823, %v824
      %v826 = vrot.slane %v824, 2
      %v827 = vrot.slane %v721, 7
      %v828 = vsel %vm737, %v826, %v827
      %v829 = vrot.slane %v827, 2
      %v830 = vrot.slane %v723, 7
      %v831 = vsel %vm737, %v829, %v830
      %v832 = vrot.slane %v830, 2
      %v833 = vrot.slane %v730, 7
      %v834 = vsel %vm737, %v832, %v833
      %vm867 = vcmask 517120
      %v868 = vsel %vm867, %v741, -inf
      %v869 = vrot.slane %v868, 4
      %v870 = vmax.f32 %v868, %v869
      %v871 = vrot.slane %v870, 2
      %v872 = vmax.f32 %v870, %v871
      %v873 = vrot.slane %v872, 1
      %v874 = vmax.f32 %v872, %v873
      %v875 = vsel %vm867, %v744, -inf
      %v876 = vrot.slane %v875, 4
      %v877 = vmax.f32 %v875, %v876
      %v878 = vrot.slane %v877, 2
      %v879 = vmax.f32 %v877, %v878
      %v880 = vrot.slane %v879, 1
      %v881 = vmax.f32 %v879, %v880
      %v882 = vsel %vm867, %v747, -inf
      %v883 = vrot.slane %v882, 4
      %v884 = vmax.f32 %v882, %v883
      %v885 = vrot.slane %v884, 2
      %v886 = vmax.f32 %v884, %v885
      %v887 = vrot.slane %v886, 1
      %v888 = vmax.f32 %v886, %v887
      %v889 = vsel %vm867, %v750, -inf
      %v890 = vrot.slane %v889, 4
      %v891 = vmax.f32 %v889, %v890
      %v892 = vrot.slane %v891, 2
      %v893 = vmax.f32 %v891, %v892
      %v894 = vrot.slane %v893, 1
      %v895 = vmax.f32 %v893, %v894
      %v896 = vsel %vm867, %v753, -inf
      %v897 = vrot.slane %v896, 4
      %v898 = vmax.f32 %v896, %v897
      %v899 = vrot.slane %v898, 2
      %v900 = vmax.f32 %v898, %v899
      %v901 = vrot.slane %v900, 1
      %v902 = vmax.f32 %v900, %v901
      %v903 = vsel %vm867, %v756, -inf
      %v904 = vrot.slane %v903, 4
      %v905 = vmax.f32 %v903, %v904
      %v906 = vrot.slane %v905, 2
      %v907 = vmax.f32 %v905, %v906
      %v908 = vrot.slane %v907, 1
      %v909 = vmax.f32 %v907, %v908
      %v910 = vsel %vm867, %v759, -inf
      %v911 = vrot.slane %v910, 4
      %v912 = vmax.f32 %v910, %v911
      %v913 = vrot.slane %v912, 2
      %v914 = vmax.f32 %v912, %v913
      %v915 = vrot.slane %v914, 1
      %v916 = vmax.f32 %v914, %v915
      %v917 = vsel %vm867, %v762, -inf
      %v918 = vrot.slane %v917, 4
      %v919 = vmax.f32 %v917, %v918
      %v920 = vrot.slane %v919, 2
      %v921 = vmax.f32 %v919, %v920
      %v922 = vrot.slane %v921, 1
      %v923 = vmax.f32 %v921, %v922
      %v924 = vsel %vm867, %v765, -inf
      %v925 = vrot.slane %v924, 4
      %v926 = vmax.f32 %v924, %v925
      %v927 = vrot.slane %v926, 2
      %v928 = vmax.f32 %v926, %v927
      %v929 = vrot.slane %v928, 1
      %v930 = vmax.f32 %v928, %v929
      %v931 = vsel %vm867, %v768, -inf
      %v932 = vrot.slane %v931, 4
      %v933 = vmax.f32 %v931, %v932
      %v934 = vrot.slane %v933, 2
      %v935 = vmax.f32 %v933, %v934
      %v936 = vrot.slane %v935, 1
      %v937 = vmax.f32 %v935, %v936
      %v938 = vsel %vm867, %v771, -inf
      %v939 = vrot.slane %v938, 4
      %v940 = vmax.f32 %v938, %v939
      %v941 = vrot.slane %v940, 2
      %v942 = vmax.f32 %v940, %v941
      %v943 = vrot.slane %v942, 1
      %v944 = vmax.f32 %v942, %v943
      %v945 = vsel %vm867, %v774, -inf
      %v946 = vrot.slane %v945, 4
      %v947 = vmax.f32 %v945, %v946
      %v948 = vrot.slane %v947, 2
      %v949 = vmax.f32 %v947, %v948
      %v950 = vrot.slane %v949, 1
      %v951 = vmax.f32 %v949, %v950
      %v952 = vsel %vm867, %v777, -inf
      %v953 = vrot.slane %v952, 4
      %v954 = vmax.f32 %v952, %v953
      %v955 = vrot.slane %v954, 2
      %v956 = vmax.f32 %v954, %v955
      %v957 = vrot.slane %v956, 1
      %v958 = vmax.f32 %v956, %v957
      %v959 = vsel %vm867, %v780, -inf
      %v960 = vrot.slane %v959, 4
      %v961 = vmax.f32 %v959, %v960
      %v962 = vrot.slane %v961, 2
      %v963 = vmax.f32 %v961, %v962
      %v964 = vrot.slane %v963, 1
      %v965 = vmax.f32 %v963, %v964
      %v966 = vsel %vm867, %v783, -inf
      %v967 = vrot.slane %v966, 4
      %v968 = vmax.f32 %v966, %v967
      %v969 = vrot.slane %v968, 2
      %v970 = vmax.f32 %v968, %v969
      %v971 = vrot.slane %v970, 1
      %v972 = vmax.f32 %v970, %v971
      %v973 = vsel %vm867, %v786, -inf
      %v974 = vrot.slane %v973, 4
      %v975 = vmax.f32 %v973, %v974
      %v976 = vrot.slane %v975, 2
      %v977 = vmax.f32 %v975, %v976
      %v978 = vrot.slane %v977, 1
      %v979 = vmax.f32 %v977, %v978
      %v980 = vsel %vm867, %v789, -inf
      %v981 = vrot.slane %v980, 4
      %v982 = vmax.f32 %v980, %v981
      %v983 = vrot.slane %v982, 2
      %v984 = vmax.f32 %v982, %v983
      %v985 = vrot.slane %v984, 1
      %v986 = vmax.f32 %v984, %v985
      %v987 = vsel %vm867, %v792, -inf
      %v988 = vrot.slane %v987, 4
      %v989 = vmax.f32 %v987, %v988
      %v990 = vrot.slane %v989, 2
      %v991 = vmax.f32 %v989, %v990
      %v992 = vrot.slane %v991, 1
      %v993 = vmax.f32 %v991, %v992
      %v994 = vsel %vm867, %v795, -inf
      %v995 = vrot.slane %v994, 4
      %v996 = vmax.f32 %v994, %v995
      %v997 = vrot.slane %v996, 2
      %v998 = vmax.f32 %v996, %v997
      %v999 = vrot.slane %v998, 1
      %v1000 = vmax.f32 %v998, %v999
      %v1001 = vsel %vm867, %v798, -inf
      %v1002 = vrot.slane %v1001, 4
      %v1003 = vmax.f32 %v1001, %v1002
      %v1004 = vrot.slane %v1003, 2
      %v1005 = vmax.f32 %v1003, %v1004
      %v1006 = vrot.slane %v1005, 1
      %v1007 = vmax.f32 %v1005, %v1006
      %v1008 = vsel %vm867, %v801, -inf
      %v1009 = vrot.slane %v1008, 4
      %v1010 = vmax.f32 %v1008, %v1009
      %v1011 = vrot.slane %v1010, 2
      %v1012 = vmax.f32 %v1010, %v1011
      %v1013 = vrot.slane %v1012, 1
      %v1014 = vmax.f32 %v1012, %v1013
      %v1015 = vsel %vm867, %v804, -inf
      %v1016 = vrot.slane %v1015, 4
      %v1017 = vmax.f32 %v1015, %v1016
      %v1018 = vrot.slane %v1017, 2
      %v1019 = vmax.f32 %v1017, %v1018
      %v1020 = vrot.slane %v1019, 1
      %v1021 = vmax.f32 %v1019, %v1020
      %v1022 = vsel %vm867, %v807, -inf
      %v1023 = vrot.slane %v1022, 4
      %v1024 = vmax.f32 %v1022, %v1023
      %v1025 = vrot.slane %v1024, 2
      %v1026 = vmax.f32 %v1024, %v1025
      %v1027 = vrot.slane %v1026, 1
      %v1028 = vmax.f32 %v1026, %v1027
      %v1029 = vsel %vm867, %v810, -inf
      %v1030 = vrot.slane %v1029, 4
      %v1031 = vmax.f32 %v1029, %v1030
      %v1032 = vrot.slane %v1031, 2
      %v1033 = vmax.f32 %v1031, %v1032
      %v1034 = vrot.slane %v1033, 1
      %v1035 = vmax.f32 %v1033, %v1034
      %v1036 = vsel %vm867, %v813, -inf
      %v1037 = vrot.slane %v1036, 4
      %v1038 = vmax.f32 %v1036, %v1037
      %v1039 = vrot.slane %v1038, 2
      %v1040 = vmax.f32 %v1038, %v1039
      %v1041 = vrot.slane %v1040, 1
      %v1042 = vmax.f32 %v1040, %v1041
      %v1043 = vsel %vm867, %v816, -inf
      %v1044 = vrot.slane %v1043, 4
      %v1045 = vmax.f32 %v1043, %v1044
      %v1046 = vrot.slane %v1045, 2
      %v1047 = vmax.f32 %v1045, %v1046
      %v1048 = vrot.slane %v1047, 1
      %v1049 = vmax.f32 %v1047, %v1048
      %v1050 = vsel %vm867, %v819, -inf
      %v1051 = vrot.slane %v1050, 4
      %v1052 = vmax.f32 %v1050, %v1051
      %v1053 = vrot.slane %v1052, 2
      %v1054 = vmax.f32 %v1052, %v1053
      %v1055 = vrot.slane %v1054, 1
      %v1056 = vmax.f32 %v1054, %v1055
      %v1057 = vsel %vm867, %v822, -inf
      %v1058 = vrot.slane %v1057, 4
      %v1059 = vmax.f32 %v1057, %v1058
      %v1060 = vrot.slane %v1059, 2
      %v1061 = vmax.f32 %v1059, %v1060
      %v1062 = vrot.slane %v1061, 1
      %v1063 = vmax.f32 %v1061, %v1062
      %v1064 = vsel %vm867, %v825, -inf
      %v1065 = vrot.slane %v1064, 4
      %v1066 = vmax.f32 %v1064, %v1065
      %v1067 = vrot.slane %v1066, 2
      %v1068 = vmax.f32 %v1066, %v1067
      %v1069 = vrot.slane %v1068, 1
      %v1070 = vmax.f32 %v1068, %v1069
      %v1071 = vsel %vm867, %v828, -inf
      %v1072 = vrot.slane %v1071, 4
      %v1073 = vmax.f32 %v1071, %v1072
      %v1074 = vrot.slane %v1073, 2
      %v1075 = vmax.f32 %v1073, %v1074
      %v1076 = vrot.slane %v1075, 1
      %v1077 = vmax.f32 %v1075, %v1076
      %v1078 = vsel %vm867, %v831, -inf
      %v1079 = vrot.slane %v1078, 4
      %v1080 = vmax.f32 %v1078, %v1079
      %v1081 = vrot.slane %v1080, 2
      %v1082 = vmax.f32 %v1080, %v1081
      %v1083 = vrot.slane %v1082, 1
      %v1084 = vmax.f32 %v1082, %v1083
      %v1085 = vsel %vm867, %v834, -inf
      %v1086 = vrot.slane %v1085, 4
      %v1087 = vmax.f32 %v1085, %v1086
      %v1088 = vrot.slane %v1087, 2
      %v1089 = vmax.f32 %v1087, %v1088
      %v1090 = vrot.slane %v1089, 1
      %v1091 = vmax.f32 %v1089, %v1090
      %v1124 = vsel %vm732, %v881, %v874
      %vm1125 = vcmask 1043459
      %v1126 = vsel %vm1125, %v888, %v1124
      %v1127 = vsel %vm734, %v895, %v1126
      %vm1128 = vcmask 1045509
      %v1129 = vsel %vm1128, %v902, %v1127
      %v1130 = vsel %vm736, %v909, %v1129
      %vm1131 = vcmask 1047559
      %v1132 = vsel %vm1131, %v916, %v1130
      %vm1133 = vcmask 1041409
      %v1134 = vsel %vm1133, %v930, %v923
      %v1135 = vsel %vm732, %v937, %v1134
      %v1136 = vsel %vm1125, %v944, %v1135
      %v1137 = vsel %vm734, %v951, %v1136
      %v1138 = vsel %vm1128, %v958, %v1137
      %v1139 = vsel %vm736, %v965, %v1138
      %v1140 = vsel %vm1131, %v972, %v1139
      %v1141 = vsel %vm1133, %v986, %v979
      %v1142 = vsel %vm732, %v993, %v1141
      %v1143 = vsel %vm1125, %v1000, %v1142
      %v1144 = vsel %vm734, %v1007, %v1143
      %v1145 = vsel %vm1128, %v1014, %v1144
      %v1146 = vsel %vm736, %v1021, %v1145
      %v1147 = vsel %vm1131, %v1028, %v1146
      %v1148 = vsel %vm1133, %v1042, %v1035
      %v1149 = vsel %vm732, %v1049, %v1148
      %v1150 = vsel %vm1125, %v1056, %v1149
      %v1151 = vsel %vm734, %v1063, %v1150
      %v1152 = vsel %vm1128, %v1070, %v1151
      %v1153 = vsel %vm736, %v1077, %v1152
      %v1154 = vsel %vm1131, %v1084, %v1153
      %v1156 = vsel %vm731, %v570, %v1132
      %vm1158 = vcmask 1043456
      %v1159 = vrot.slane %v1156, 4
      %v1160 = vrot.slane %v1140, 4
      %v1161 = vsel %vm1158, %v1159, %v1160
      %v1162 = vrot.slane %v1147, 4
      %v1163 = vsel %vm1158, %v1160, %v1162
      %v1164 = vrot.slane %v1154, 4
      %v1165 = vsel %vm1158, %v1162, %v1164
      %v1166 = vrot.slane %v1091, 4
      %v1167 = vsel %vm1158, %v1164, %v1166
      %v1173 = vsel %vm1158, 0.0, %v1159
      %vm1174 = vcmask 1044480
      %v1175 = vsel %vm1174, %v1167, 0.0
      %vm1179 = vcmask 1046528
      %v1180 = vrot.slane %v1173, 1
      %v1181 = vrot.slane %v1161, 1
      %v1182 = vsel %vm1179, %v1180, %v1181
      %v1183 = vrot.slane %v1163, 1
      %v1184 = vsel %vm1179, %v1181, %v1183
      %v1185 = vrot.slane %v1165, 1
      %v1186 = vsel %vm1179, %v1183, %v1185
      %v1187 = vrot.slane %v1175, 1
      %v1188 = vsel %vm1179, %v1185, %v1187
      %v1189 = vrot.slane 0.0, 1
      %v1190 = vsel %vm1179, %v1187, %v1189
      %1191 = vrot.lane.b32.xlu0 %v1182, 64
      %v1192 = vpop.permute.xlu0 %1191
      %1193 = vrot.lane.b32.xlu0 %v1184, 64
      %v1194 = vpop.permute.xlu0 %1193
      %1195 = vrot.lane.b32.xlu0 %v1186, 64
      %v1196 = vpop.permute.xlu0 %1195
      %1197 = vrot.lane.b32.xlu0 %v1188, 64
      %v1198 = vpop.permute.xlu0 %1197
      %1199 = vrot.lane.b32.xlu0 %v1190, 64
      %v1200 = vpop.permute.xlu0 %1199
      %vm1206 = vcmask 523264
      %v1207 = vsel %vm1206, %v1173, %v1192
      %v1208 = vsel %vm1206, %v1161, %v1194
      %v1209 = vsel %vm1206, %v1163, %v1196
      %v1210 = vsel %vm1206, %v1165, %v1198
      %v1211 = vsel %vm1206, %v1175, %v1200
      %v1212 = vld [vmem:[%s4] sm:$0xff]
      %v1213 = vld [vmem:[%s4 + $0x8] sm:$0xff]
      %v1214 = vld [vmem:[%s4 + $0x10] sm:$0xff]
      %v1215 = vld [vmem:[%s4 + $0x18] sm:$0xff]
      %v1216 = vld [vmem:[%s4 + $0x20] sm:$0xff]
      %v1217 = vld [vmem:[%s4 + $0x28] sm:$0xff]
      %v1218 = vld [vmem:[%s4 + $0x30] sm:$0xff]
      %v1219 = vld [vmem:[%s4 + $0x38] sm:$0xff]
      %v1220 = vld [vmem:[%s4 + $0x40] sm:$0xff]
      %v1221 = vld [vmem:[%s4 + $0x48] sm:$0xff]
      %v1222 = vld [vmem:[%s4 + $0x50] sm:$0xff]
      %v1223 = vld [vmem:[%s4 + $0x58] sm:$0xff]
      %v1224 = vld [vmem:[%s4 + $0x60] sm:$0xff]
      %v1225 = vld [vmem:[%s4 + $0x68] sm:$0xff]
      %v1226 = vld [vmem:[%s4 + $0x70] sm:$0xff]
      %v1227 = vld [vmem:[%s4 + $0x78] sm:$0xff]
      %s1228 = scalar_lea.vmem %s4, 128
      %v1229 = vld [vmem:[%s1228] sm:$0xff]
      %v1230 = vld [vmem:[%s1228 + $0x8] sm:$0xff]
      %v1231 = vld [vmem:[%s1228 + $0x10] sm:$0xff]
      %v1232 = vld [vmem:[%s1228 + $0x18] sm:$0xff]
      %v1233 = vld [vmem:[%s1228 + $0x20] sm:$0xff]
      %v1234 = vld [vmem:[%s1228 + $0x28] sm:$0xff]
      %v1235 = vld [vmem:[%s1228 + $0x30] sm:$0xff]
      %v1236 = vld [vmem:[%s1228 + $0x38] sm:$0xff]
      %v1237 = vld [vmem:[%s1228 + $0x40] sm:$0xff]
      %v1238 = vld [vmem:[%s1228 + $0x48] sm:$0xff]
      %v1239 = vld [vmem:[%s1228 + $0x50] sm:$0xff]
      %v1240 = vld [vmem:[%s1228 + $0x58] sm:$0xff]
      %v1241 = vld [vmem:[%s1228 + $0x60] sm:$0xff]
      %v1242 = vld [vmem:[%s1228 + $0x68] sm:$0xff]
      %v1243 = vld [vmem:[%s1228 + $0x70] sm:$0xff]
      %v1244 = vld [vmem:[%s1228 + $0x78] sm:$0xff]
      %vm1250 = vcmask 1045504
      %v1251 = vrot.slane %v1207, 2
      %v1252 = vrot.slane %v1208, 2
      %v1253 = vsel %vm1250, %v1251, %v1252
      %v1254 = vrot.slane %v1209, 2
      %v1255 = vsel %vm1250, %v1252, %v1254
      %v1256 = vrot.slane %v1210, 2
      %v1257 = vsel %vm1250, %v1254, %v1256
      %v1258 = vrot.slane %v1211, 2
      %v1259 = vsel %vm1250, %v1256, %v1258
      %1265 = vmatprep.subr.mxu0 0.0
      %1266 = vmatpush1.msra.mxu0 %v1244
      %1267 = vmatprep.subr.mxu0 0.0
      %1268 = vmatpush1.msra.mxu0 %v1243
      %1269 = vmatprep.subr.mxu0 0.0
      %1270 = vmatpush1.msra.mxu0 %v1242
      %1271 = vmatprep.subr.mxu0 0.0
      %1272 = vmatpush1.msra.mxu0 %v1241
      %1273 = vmatprep.subr.mxu0 0.0
      %1274 = vmatpush1.msra.mxu0 %v1240
      %1275 = vmatprep.subr.mxu0 0.0
      %1276 = vmatpush1.msra.mxu0 %v1239
      %1277 = vmatprep.subr.mxu0 0.0
      %1278 = vmatpush1.msra.mxu0 %v1238
      %1279 = vmatprep.subr.mxu0 0.0
      %1280 = vmatpush1.msra.mxu0 %v1237
      %1281 = vmatprep.subr.mxu0 0.0
      %1282 = vmatpush1.msra.mxu0 %v1236
      %1283 = vmatprep.subr.mxu0 0.0
      %1284 = vmatpush1.msra.mxu0 %v1235
      %1285 = vmatprep.subr.mxu0 0.0
      %1286 = vmatpush1.msra.mxu0 %v1234
      %1287 = vmatprep.subr.mxu0 0.0
      %1288 = vmatpush1.msra.mxu0 %v1233
      %1289 = vmatprep.subr.mxu0 0.0
      %1290 = vmatpush1.msra.mxu0 %v1232
      %1291 = vmatprep.subr.mxu0 0.0
      %1292 = vmatpush1.msra.mxu0 %v1231
      %1293 = vmatprep.subr.mxu0 0.0
      %1294 = vmatpush1.msra.mxu0 %v1230
      %1295 = vmatprep.subr.mxu0 0.0
      %1296 = vmatpush1.msra.mxu0 %v1229
      %1297 = vmatprep.subr.mxu0 0.0
      %1298 = vmatpush2.msra.mxu0 0.0
      %1299 = vmatprep.subr.mxu0 0.0
      %1300 = vmatpush2.msra.mxu0 0.0
      %1301 = vmatprep.subr.mxu0 0.0
      %1302 = vmatpush2.msra.mxu0 0.0
      %1303 = vmatprep.subr.mxu0 0.0
      %1304 = vmatpush2.msra.mxu0 0.0
      %1305 = vmatprep.subr.mxu0 0.0
      %1306 = vmatpush2.msra.mxu0 0.0
      %1307 = vmatprep.subr.mxu0 0.0
      %1308 = vmatpush2.msra.mxu0 0.0
      %1309 = vmatprep.subr.mxu0 0.0
      %1310 = vmatpush2.msra.mxu0 0.0
      %1311 = vmatprep.subr.mxu0 0.0
      %1312 = vmatpush2.msra.mxu0 0.0
      %1313 = vmatprep.subr.mxu0 0.0
      %1314 = vmatpush2.msra.mxu0 0.0
      %1315 = vmatprep.subr.mxu0 0.0
      %1316 = vmatpush2.msra.mxu0 0.0
      %1317 = vmatprep.subr.mxu0 0.0
      %1318 = vmatpush2.msra.mxu0 0.0
      %1319 = vmatprep.subr.mxu0 0.0
      %1320 = vmatpush2.msra.mxu0 0.0
      %1321 = vmatprep.subr.mxu0 0.0
      %1322 = vmatpush2.msra.mxu0 0.0
      %1323 = vmatprep.subr.mxu0 0.0
      %1324 = vmatpush2.msra.mxu0 0.0
      %1325 = vmatprep.subr.mxu0 0.0
      %1326 = vmatpush2.msra.mxu0 0.0
      %1327 = vmatprep.subr.mxu0 0.0
      %1328 = vmatpush2.msra.mxu0 0.0
      %1329 = vmatprep.mubr.f32.mxu0 0.0
      %1330 = vmatmul.mubr.f32.gmra.mxu0 %v1253
      %v1331 = vpop.f32.mrf.mxu0
      %v1332 = vadd.f32 0.0, %v1331
      %v1333 = vpop.f32.mrf.mxu0
      %1334 = vmatprep.mubr.f32.mxu0 0.0
      %1335 = vmatmul.mubr.f32.gmra.mxu0 %v1255
      %v1336 = vpop.f32.mrf.mxu0
      %v1337 = vadd.f32 0.0, %v1336
      %v1338 = vpop.f32.mrf.mxu0
      %1339 = vmatprep.mubr.f32.mxu0 0.0
      %1340 = vmatmul.mubr.f32.gmra.mxu0 %v1257
      %v1341 = vpop.f32.mrf.mxu0
      %v1342 = vadd.f32 0.0, %v1341
      %v1343 = vpop.f32.mrf.mxu0
      %1344 = vmatprep.mubr.f32.mxu0 0.0
      %1345 = vmatmul.mubr.f32.gmra.mxu0 %v1259
      %v1346 = vpop.f32.mrf.mxu0
      %v1347 = vadd.f32 0.0, %v1346
      %v1348 = vpop.f32.mrf.mxu0
      %1349 = vmatprep.mubr.f32.mxu0 0.0
      %1350 = vmatmul.mubr.f32.gmra.mxu0 %v1258
      %v1351 = vpop.f32.mrf.mxu0
      %v1352 = vadd.f32 0.0, %v1351
      %v1353 = vpop.f32.mrf.mxu0
      %1354 = vdwg.mxu0
      %1355 = vmatprep.subr.mxu0 0.0
      %1356 = vmatpush1.msra.mxu0 %v1227
      %1357 = vmatprep.subr.mxu0 0.0
      %1358 = vmatpush1.msra.mxu0 %v1226
      %1359 = vmatprep.subr.mxu0 0.0
      %1360 = vmatpush1.msra.mxu0 %v1225
      %1361 = vmatprep.subr.mxu0 0.0
      %1362 = vmatpush1.msra.mxu0 %v1224
      %1363 = vmatprep.subr.mxu0 0.0
      %1364 = vmatpush1.msra.mxu0 %v1223
      %1365 = vmatprep.subr.mxu0 0.0
      %1366 = vmatpush1.msra.mxu0 %v1222
      %1367 = vmatprep.subr.mxu0 0.0
      %1368 = vmatpush1.msra.mxu0 %v1221
      %1369 = vmatprep.subr.mxu0 0.0
      %1370 = vmatpush1.msra.mxu0 %v1220
      %1371 = vmatprep.subr.mxu0 0.0
      %1372 = vmatpush1.msra.mxu0 %v1219
      %1373 = vmatprep.subr.mxu0 0.0
      %1374 = vmatpush1.msra.mxu0 %v1218
      %1375 = vmatprep.subr.mxu0 0.0
      %1376 = vmatpush1.msra.mxu0 %v1217
      %1377 = vmatprep.subr.mxu0 0.0
      %1378 = vmatpush1.msra.mxu0 %v1216
      %1379 = vmatprep.subr.mxu0 0.0
      %1380 = vmatpush1.msra.mxu0 %v1215
      %1381 = vmatprep.subr.mxu0 0.0
      %1382 = vmatpush1.msra.mxu0 %v1214
      %1383 = vmatprep.subr.mxu0 0.0
      %1384 = vmatpush1.msra.mxu0 %v1213
      %1385 = vmatprep.subr.mxu0 0.0
      %1386 = vmatpush1.msra.mxu0 %v1212
      %1387 = vmatprep.subr.mxu0 0.0
      %1388 = vmatpush2.msra.mxu0 0.0
      %1389 = vmatprep.subr.mxu0 0.0
      %1390 = vmatpush2.msra.mxu0 0.0
      %1391 = vmatprep.subr.mxu0 0.0
      %1392 = vmatpush2.msra.mxu0 0.0
      %1393 = vmatprep.subr.mxu0 0.0
      %1394 = vmatpush2.msra.mxu0 0.0
      %1395 = vmatprep.subr.mxu0 0.0
      %1396 = vmatpush2.msra.mxu0 0.0
      %1397 = vmatprep.subr.mxu0 0.0
      %1398 = vmatpush2.msra.mxu0 0.0
      %1399 = vmatprep.subr.mxu0 0.0
      %1400 = vmatpush2.msra.mxu0 0.0
      %1401 = vmatprep.subr.mxu0 0.0
      %1402 = vmatpush2.msra.mxu0 0.0
      %1403 = vmatprep.subr.mxu0 0.0
      %1404 = vmatpush2.msra.mxu0 0.0
      %1405 = vmatprep.subr.mxu0 0.0
      %1406 = vmatpush2.msra.mxu0 0.0
      %1407 = vmatprep.subr.mxu0 0.0
      %1408 = vmatpush2.msra.mxu0 0.0
      %1409 = vmatprep.subr.mxu0 0.0
      %1410 = vmatpush2.msra.mxu0 0.0
      %1411 = vmatprep.subr.mxu0 0.0
      %1412 = vmatpush2.msra.mxu0 0.0
      %1413 = vmatprep.subr.mxu0 0.0
      %1414 = vmatpush2.msra.mxu0 0.0
      %1415 = vmatprep.subr.mxu0 0.0
      %1416 = vmatpush2.msra.mxu0 0.0
      %1417 = vmatprep.subr.mxu0 0.0
      %1418 = vmatpush2.msra.mxu0 0.0
      %1419 = vmatprep.mubr.f32.mxu0 0.0
      %1420 = vmatmul.mubr.f32.gmra.mxu0 %v1207
      %v1421 = vpop.f32.mrf.mxu0
      %v1422 = vadd.f32 %v1332, %v1421
      %v1423 = vpop.f32.mrf.mxu0
      %1424 = vmatprep.mubr.f32.mxu0 0.0
      %1425 = vmatmul.mubr.f32.gmra.mxu0 %v1208
      %v1426 = vpop.f32.mrf.mxu0
      %v1427 = vadd.f32 %v1337, %v1426
      %v1428 = vpop.f32.mrf.mxu0
      %1429 = vmatprep.mubr.f32.mxu0 0.0
      %1430 = vmatmul.mubr.f32.gmra.mxu0 %v1209
      %v1431 = vpop.f32.mrf.mxu0
      %v1432 = vadd.f32 %v1342, %v1431
      %v1433 = vpop.f32.mrf.mxu0
      %1434 = vmatprep.mubr.f32.mxu0 0.0
      %1435 = vmatmul.mubr.f32.gmra.mxu0 %v1210
      %v1436 = vpop.f32.mrf.mxu0
      %v1437 = vadd.f32 %v1347, %v1436
      %v1438 = vpop.f32.mrf.mxu0
      %1439 = vmatprep.mubr.f32.mxu0 0.0
      %1440 = vmatmul.mubr.f32.gmra.mxu0 %v1211
      %v1441 = vpop.f32.mrf.mxu0
      %v1442 = vadd.f32 %v1352, %v1441
      %v1443 = vpop.f32.mrf.mxu0
      %1444 = vdwg.mxu0
      %s1445 = scalar_lea.vmem %s4, 256
      %v1446 = vld [vmem:[%s1445] sm:$0xff]
      %v1447 = vld [vmem:[%s1445 + $0x8] sm:$0xff]
      %v1448 = vld [vmem:[%s1445 + $0x10] sm:$0xff]
      %v1449 = vld [vmem:[%s1445 + $0x18] sm:$0xff]
      %v1450 = vld [vmem:[%s1445 + $0x20] sm:$0xff]
      %v1451 = vld [vmem:[%s1445 + $0x28] sm:$0xff]
      %v1452 = vld [vmem:[%s1445 + $0x30] sm:$0xff]
      %v1453 = vld [vmem:[%s1445 + $0x38] sm:$0xff]
      %v1454 = vld [vmem:[%s1445 + $0x40] sm:$0xff]
      %v1455 = vld [vmem:[%s1445 + $0x48] sm:$0xff]
      %v1456 = vld [vmem:[%s1445 + $0x50] sm:$0xff]
      %v1457 = vld [vmem:[%s1445 + $0x58] sm:$0xff]
      %v1458 = vld [vmem:[%s1445 + $0x60] sm:$0xff]
      %v1459 = vld [vmem:[%s1445 + $0x68] sm:$0xff]
      %v1460 = vld [vmem:[%s1445 + $0x70] sm:$0xff]
      %v1461 = vld [vmem:[%s1445 + $0x78] sm:$0xff]
      %v1462 = vrot.slane %v1207, 4
      %v1463 = vrot.slane %v1208, 4
      %v1464 = vsel %vm1158, %v1462, %v1463
      %v1465 = vrot.slane %v1209, 4
      %v1466 = vsel %vm1158, %v1463, %v1465
      %v1467 = vrot.slane %v1210, 4
      %v1468 = vsel %vm1158, %v1465, %v1467
      %v1469 = vrot.slane %v1211, 4
      %v1470 = vsel %vm1158, %v1467, %v1469
      %1476 = vmatprep.subr.mxu0 0.0
      %1477 = vmatpush1.msra.mxu0 %v1461
      %1478 = vmatprep.subr.mxu0 0.0
      %1479 = vmatpush1.msra.mxu0 %v1460
      %1480 = vmatprep.subr.mxu0 0.0
      %1481 = vmatpush1.msra.mxu0 %v1459
      %1482 = vmatprep.subr.mxu0 0.0
      %1483 = vmatpush1.msra.mxu0 %v1458
      %1484 = vmatprep.subr.mxu0 0.0
      %1485 = vmatpush1.msra.mxu0 %v1457
      %1486 = vmatprep.subr.mxu0 0.0
      %1487 = vmatpush1.msra.mxu0 %v1456
      %1488 = vmatprep.subr.mxu0 0.0
      %1489 = vmatpush1.msra.mxu0 %v1455
      %1490 = vmatprep.subr.mxu0 0.0
      %1491 = vmatpush1.msra.mxu0 %v1454
      %1492 = vmatprep.subr.mxu0 0.0
      %1493 = vmatpush1.msra.mxu0 %v1453
      %1494 = vmatprep.subr.mxu0 0.0
      %1495 = vmatpush1.msra.mxu0 %v1452
      %1496 = vmatprep.subr.mxu0 0.0
      %1497 = vmatpush1.msra.mxu0 %v1451
      %1498 = vmatprep.subr.mxu0 0.0
      %1499 = vmatpush1.msra.mxu0 %v1450
      %1500 = vmatprep.subr.mxu0 0.0
      %1501 = vmatpush1.msra.mxu0 %v1449
      %1502 = vmatprep.subr.mxu0 0.0
      %1503 = vmatpush1.msra.mxu0 %v1448
      %1504 = vmatprep.subr.mxu0 0.0
      %1505 = vmatpush1.msra.mxu0 %v1447
      %1506 = vmatprep.subr.mxu0 0.0
      %1507 = vmatpush1.msra.mxu0 %v1446
      %1508 = vmatprep.subr.mxu0 0.0
      %1509 = vmatpush2.msra.mxu0 0.0
      %1510 = vmatprep.subr.mxu0 0.0
      %1511 = vmatpush2.msra.mxu0 0.0
      %1512 = vmatprep.subr.mxu0 0.0
      %1513 = vmatpush2.msra.mxu0 0.0
      %1514 = vmatprep.subr.mxu0 0.0
      %1515 = vmatpush2.msra.mxu0 0.0
      %1516 = vmatprep.subr.mxu0 0.0
      %1517 = vmatpush2.msra.mxu0 0.0
      %1518 = vmatprep.subr.mxu0 0.0
      %1519 = vmatpush2.msra.mxu0 0.0
      %1520 = vmatprep.subr.mxu0 0.0
      %1521 = vmatpush2.msra.mxu0 0.0
      %1522 = vmatprep.subr.mxu0 0.0
      %1523 = vmatpush2.msra.mxu0 0.0
      %1524 = vmatprep.subr.mxu0 0.0
      %1525 = vmatpush2.msra.mxu0 0.0
      %1526 = vmatprep.subr.mxu0 0.0
      %1527 = vmatpush2.msra.mxu0 0.0
      %1528 = vmatprep.subr.mxu0 0.0
      %1529 = vmatpush2.msra.mxu0 0.0
      %1530 = vmatprep.subr.mxu0 0.0
      %1531 = vmatpush2.msra.mxu0 0.0
      %1532 = vmatprep.subr.mxu0 0.0
      %1533 = vmatpush2.msra.mxu0 0.0
      %1534 = vmatprep.subr.mxu0 0.0
      %1535 = vmatpush2.msra.mxu0 0.0
      %1536 = vmatprep.subr.mxu0 0.0
      %1537 = vmatpush2.msra.mxu0 0.0
      %1538 = vmatprep.subr.mxu0 0.0
      %1539 = vmatpush2.msra.mxu0 0.0
      %1540 = vmatprep.mubr.f32.mxu0 0.0
      %1541 = vmatmul.mubr.f32.gmra.mxu0 %v1464
      %v1542 = vpop.f32.mrf.mxu0
      %v1543 = vadd.f32 0.0, %v1542
      %v1544 = vpop.f32.mrf.mxu0
      %1545 = vmatprep.mubr.f32.mxu0 0.0
      %1546 = vmatmul.mubr.f32.gmra.mxu0 %v1466
      %v1547 = vpop.f32.mrf.mxu0
      %v1548 = vadd.f32 0.0, %v1547
      %v1549 = vpop.f32.mrf.mxu0
      %1550 = vmatprep.mubr.f32.mxu0 0.0
      %1551 = vmatmul.mubr.f32.gmra.mxu0 %v1468
      %v1552 = vpop.f32.mrf.mxu0
      %v1553 = vadd.f32 0.0, %v1552
      %v1554 = vpop.f32.mrf.mxu0
      %1555 = vmatprep.mubr.f32.mxu0 0.0
      %1556 = vmatmul.mubr.f32.gmra.mxu0 %v1470
      %v1557 = vpop.f32.mrf.mxu0
      %v1558 = vadd.f32 0.0, %v1557
      %v1559 = vpop.f32.mrf.mxu0
      %1560 = vmatprep.mubr.f32.mxu0 0.0
      %1561 = vmatmul.mubr.f32.gmra.mxu0 %v1469
      %v1562 = vpop.f32.mrf.mxu0
      %v1563 = vadd.f32 0.0, %v1562
      %v1564 = vpop.f32.mrf.mxu0
      %1565 = vdwg.mxu0
      %v1566 = vadd.f32 %v1422, %v1543
      %v1567 = vadd.f32 %v1427, %v1548
      %v1568 = vadd.f32 %v1432, %v1553
      %v1569 = vadd.f32 %v1437, %v1558
      %v1570 = vadd.f32 %v1442, %v1563
      %s1571 = scalar_lea.vmem %s4, 384
      %v1572 = vld [vmem:[%s1571] sm:$0xff]
      %v1573 = vld [vmem:[%s1571 + $0x8] sm:$0xff]
      %v1574 = vld [vmem:[%s1571 + $0x10] sm:$0xff]
      %v1575 = vld [vmem:[%s1571 + $0x18] sm:$0xff]
      %v1576 = vld [vmem:[%s1571 + $0x20] sm:$0xff]
      %v1577 = vld [vmem:[%s1571 + $0x28] sm:$0xff]
      %v1578 = vld [vmem:[%s1571 + $0x30] sm:$0xff]
      %v1579 = vld [vmem:[%s1571 + $0x38] sm:$0xff]
      %v1580 = vld [vmem:[%s1571 + $0x40] sm:$0xff]
      %v1581 = vld [vmem:[%s1571 + $0x48] sm:$0xff]
      %v1582 = vld [vmem:[%s1571 + $0x50] sm:$0xff]
      %v1583 = vld [vmem:[%s1571 + $0x58] sm:$0xff]
      %v1584 = vld [vmem:[%s1571 + $0x60] sm:$0xff]
      %v1585 = vld [vmem:[%s1571 + $0x68] sm:$0xff]
      %v1586 = vld [vmem:[%s1571 + $0x70] sm:$0xff]
      %v1587 = vld [vmem:[%s1571 + $0x78] sm:$0xff]
      %vm1588 = vcmask 1041408
      %v1589 = vrot.slane %v1207, 6
      %v1590 = vrot.slane %v1208, 6
      %v1591 = vsel %vm1588, %v1589, %v1590
      %v1592 = vrot.slane %v1209, 6
      %v1593 = vsel %vm1588, %v1590, %v1592
      %v1594 = vrot.slane %v1210, 6
      %v1595 = vsel %vm1588, %v1592, %v1594
      %v1596 = vrot.slane %v1211, 6
      %v1597 = vsel %vm1588, %v1594, %v1596
      %1603 = vmatprep.subr.mxu0 0.0
      %1604 = vmatpush1.msra.mxu0 %v1587
      %1605 = vmatprep.subr.mxu0 0.0
      %1606 = vmatpush1.msra.mxu0 %v1586
      %1607 = vmatprep.subr.mxu0 0.0
      %1608 = vmatpush1.msra.mxu0 %v1585
      %1609 = vmatprep.subr.mxu0 0.0
      %1610 = vmatpush1.msra.mxu0 %v1584
      %1611 = vmatprep.subr.mxu0 0.0
      %1612 = vmatpush1.msra.mxu0 %v1583
      %1613 = vmatprep.subr.mxu0 0.0
      %1614 = vmatpush1.msra.mxu0 %v1582
      %1615 = vmatprep.subr.mxu0 0.0
      %1616 = vmatpush1.msra.mxu0 %v1581
      %1617 = vmatprep.subr.mxu0 0.0
      %1618 = vmatpush1.msra.mxu0 %v1580
      %1619 = vmatprep.subr.mxu0 0.0
      %1620 = vmatpush1.msra.mxu0 %v1579
      %1621 = vmatprep.subr.mxu0 0.0
      %1622 = vmatpush1.msra.mxu0 %v1578
      %1623 = vmatprep.subr.mxu0 0.0
      %1624 = vmatpush1.msra.mxu0 %v1577
      %1625 = vmatprep.subr.mxu0 0.0
      %1626 = vmatpush1.msra.mxu0 %v1576
      %1627 = vmatprep.subr.mxu0 0.0
      %1628 = vmatpush1.msra.mxu0 %v1575
      %1629 = vmatprep.subr.mxu0 0.0
      %1630 = vmatpush1.msra.mxu0 %v1574
      %1631 = vmatprep.subr.mxu0 0.0
      %1632 = vmatpush1.msra.mxu0 %v1573
      %1633 = vmatprep.subr.mxu0 0.0
      %1634 = vmatpush1.msra.mxu0 %v1572
      %1635 = vmatprep.subr.mxu0 0.0
      %1636 = vmatpush2.msra.mxu0 0.0
      %1637 = vmatprep.subr.mxu0 0.0
      %1638 = vmatpush2.msra.mxu0 0.0
      %1639 = vmatprep.subr.mxu0 0.0
      %1640 = vmatpush2.msra.mxu0 0.0
      %1641 = vmatprep.subr.mxu0 0.0
      %1642 = vmatpush2.msra.mxu0 0.0
      %1643 = vmatprep.subr.mxu0 0.0
      %1644 = vmatpush2.msra.mxu0 0.0
      %1645 = vmatprep.subr.mxu0 0.0
      %1646 = vmatpush2.msra.mxu0 0.0
      %1647 = vmatprep.subr.mxu0 0.0
      %1648 = vmatpush2.msra.mxu0 0.0
      %1649 = vmatprep.subr.mxu0 0.0
      %1650 = vmatpush2.msra.mxu0 0.0
      %1651 = vmatprep.subr.mxu0 0.0
      %1652 = vmatpush2.msra.mxu0 0.0
      %1653 = vmatprep.subr.mxu0 0.0
      %1654 = vmatpush2.msra.mxu0 0.0
      %1655 = vmatprep.subr.mxu0 0.0
      %1656 = vmatpush2.msra.mxu0 0.0
      %1657 = vmatprep.subr.mxu0 0.0
      %1658 = vmatpush2.msra.mxu0 0.0
      %1659 = vmatprep.subr.mxu0 0.0
      %1660 = vmatpush2.msra.mxu0 0.0
      %1661 = vmatprep.subr.mxu0 0.0
      %1662 = vmatpush2.msra.mxu0 0.0
      %1663 = vmatprep.subr.mxu0 0.0
      %1664 = vmatpush2.msra.mxu0 0.0
      %1665 = vmatprep.subr.mxu0 0.0
      %1666 = vmatpush2.msra.mxu0 0.0
      %1667 = vmatprep.mubr.f32.mxu0 0.0
      %1668 = vmatmul.mubr.f32.gmra.mxu0 %v1591
      %v1669 = vpop.f32.mrf.mxu0
      %v1670 = vadd.f32 0.0, %v1669
      %v1671 = vpop.f32.mrf.mxu0
      %1672 = vmatprep.mubr.f32.mxu0 0.0
      %1673 = vmatmul.mubr.f32.gmra.mxu0 %v1593
      %v1674 = vpop.f32.mrf.mxu0
      %v1675 = vadd.f32 0.0, %v1674
      %v1676 = vpop.f32.mrf.mxu0
      %1677 = vmatprep.mubr.f32.mxu0 0.0
      %1678 = vmatmul.mubr.f32.gmra.mxu0 %v1595
      %v1679 = vpop.f32.mrf.mxu0
      %v1680 = vadd.f32 0.0, %v1679
      %v1681 = vpop.f32.mrf.mxu0
      %1682 = vmatprep.mubr.f32.mxu0 0.0
      %1683 = vmatmul.mubr.f32.gmra.mxu0 %v1597
      %v1684 = vpop.f32.mrf.mxu0
      %v1685 = vadd.f32 0.0, %v1684
      %v1686 = vpop.f32.mrf.mxu0
      %1687 = vmatprep.mubr.f32.mxu0 0.0
      %1688 = vmatmul.mubr.f32.gmra.mxu0 %v1596
      %v1689 = vpop.f32.mrf.mxu0
      %v1690 = vadd.f32 0.0, %v1689
      %v1691 = vpop.f32.mrf.mxu0
      %1692 = vdwg.mxu0
      %v1693 = vadd.f32 %v1566, %v1670
      %v1694 = vadd.f32 %v1567, %v1675
      %v1695 = vadd.f32 %v1568, %v1680
      %v1696 = vadd.f32 %v1569, %v1685
      %v1697 = vadd.f32 %v1570, %v1690
      %v1698 = vld [vmem:[%s5] sm:$0x1]
      %v1700 = vlaneseq
      %v1701 = vshrl.u32 %v1700, 7
      %v1702 = vsub.s32 0, %v1701
      %v1703 = vrot.slane %v1698, %v1702
      %v1705 = vmul.f32 %v1693, %v1703
      %v1706 = vmul.f32 %v1694, %v1703
      %v1707 = vmul.f32 %v1695, %v1703
      %v1708 = vmul.f32 %v1696, %v1703
      %v1709 = vmul.f32 %v1697, %v1703
      %v1710 = vld [vmem:[%s6] sm:$0x1]
      %v1712 = vlaneseq
      %v1713 = vshrl.u32 %v1712, 7
      %v1714 = vsub.s32 0, %v1713
      %v1715 = vrot.slane %v1710, %v1714
      %v1717 = vadd.f32 %v1705, %v1715
      %v1718 = vadd.f32 %v1706, %v1715
      %v1719 = vadd.f32 %v1707, %v1715
      %v1720 = vadd.f32 %v1708, %v1715
      %v1721 = vadd.f32 %v1709, %v1715
      %v1722 = vmax.f32 %v1717, 0.0
      %v1723 = vmax.f32 %v1718, 0.0
      %v1724 = vmax.f32 %v1719, 0.0
      %v1725 = vmax.f32 %v1720, 0.0
      %v1726 = vmax.f32 %v1721, 0.0
      %v1732 = vcombine.high %v1722, %v1722
      %v1734 = vunpack.c.l.s4 1983009808
      %v1735 = vunpack.c.0.s8 %v1734
      %v1736 = vlaneseq
      %v1737 = vshrl.u32 %v1736, 7
      %v1738 = vsub.s32 %v1735, %v1737
      %v1739 = vrot.slane %v1722, %v1738
      %v1741 = vunpack.c.l.s4 1983009808
      %v1742 = vunpack.c.0.s8 %v1741
      %v1743 = vlaneseq
      %v1744 = vshrl.u32 %v1743, 7
      %v1745 = vsub.s32 %v1742, %v1744
      %v1746 = vrot.slane %v1732, %v1745
      %v1747 = vcombine.high %v1739, %v1739
      %v1748 = vcombine.high %v1746, %v1746
      %v1749 = vcombine.high %v1723, %v1723
      %v1751 = vunpack.c.l.s4 1983009808
      %v1752 = vunpack.c.0.s8 %v1751
      %v1753 = vlaneseq
      %v1754 = vshrl.u32 %v1753, 7
      %v1755 = vsub.s32 %v1752, %v1754
      %v1756 = vrot.slane %v1723, %v1755
      %v1758 = vunpack.c.l.s4 1983009808
      %v1759 = vunpack.c.0.s8 %v1758
      %v1760 = vlaneseq
      %v1761 = vshrl.u32 %v1760, 7
      %v1762 = vsub.s32 %v1759, %v1761
      %v1763 = vrot.slane %v1749, %v1762
      %v1764 = vcombine.high %v1756, %v1756
      %v1765 = vcombine.high %v1763, %v1763
      %v1766 = vcombine.high %v1724, %v1724
      %v1768 = vunpack.c.l.s4 1983009808
      %v1769 = vunpack.c.0.s8 %v1768
      %v1770 = vlaneseq
      %v1771 = vshrl.u32 %v1770, 7
      %v1772 = vsub.s32 %v1769, %v1771
      %v1773 = vrot.slane %v1724, %v1772
      %v1775 = vunpack.c.l.s4 1983009808
      %v1776 = vunpack.c.0.s8 %v1775
      %v1777 = vlaneseq
      %v1778 = vshrl.u32 %v1777, 7
      %v1779 = vsub.s32 %v1776, %v1778
      %v1780 = vrot.slane %v1766, %v1779
      %v1781 = vcombine.high %v1773, %v1773
      %v1782 = vcombine.high %v1780, %v1780
      %v1783 = vcombine.high %v1725, %v1725
      %v1785 = vunpack.c.l.s4 1983009808
      %v1786 = vunpack.c.0.s8 %v1785
      %v1787 = vlaneseq
      %v1788 = vshrl.u32 %v1787, 7
      %v1789 = vsub.s32 %v1786, %v1788
      %v1790 = vrot.slane %v1725, %v1789
      %v1792 = vunpack.c.l.s4 1983009808
      %v1793 = vunpack.c.0.s8 %v1792
      %v1794 = vlaneseq
      %v1795 = vshrl.u32 %v1794, 7
      %v1796 = vsub.s32 %v1793, %v1795
      %v1797 = vrot.slane %v1783, %v1796
      %v1798 = vcombine.high %v1790, %v1790
      %v1799 = vcombine.high %v1797, %v1797
      %v1801 = vunpack.c.l.s4 1983009808
      %v1802 = vunpack.c.0.s8 %v1801
      %v1803 = vlaneseq
      %v1804 = vshrl.u32 %v1803, 7
      %v1805 = vsub.s32 %v1802, %v1804
      %v1806 = vrot.slane %v1726, %v1805
      %v1807 = vrot.slane %v1739, 7
      %v1808 = vrot.slane %v1807, 2
      %v1809 = vrot.slane %v1747, 7
      %v1810 = vsel %vm737, %v1808, %v1809
      %v1811 = vrot.slane %v1809, 2
      %v1812 = vrot.slane %v1746, 7
      %v1813 = vsel %vm737, %v1811, %v1812
      %v1814 = vrot.slane %v1812, 2
      %v1815 = vrot.slane %v1748, 7
      %v1816 = vsel %vm737, %v1814, %v1815
      %v1817 = vrot.slane %v1815, 2
      %v1818 = vrot.slane %v1756, 7
      %v1819 = vsel %vm737, %v1817, %v1818
      %v1820 = vrot.slane %v1818, 2
      %v1821 = vrot.slane %v1764, 7
      %v1822 = vsel %vm737, %v1820, %v1821
      %v1823 = vrot.slane %v1821, 2
      %v1824 = vrot.slane %v1763, 7
      %v1825 = vsel %vm737, %v1823, %v1824
      %v1826 = vrot.slane %v1824, 2
      %v1827 = vrot.slane %v1765, 7
      %v1828 = vsel %vm737, %v1826, %v1827
      %v1829 = vrot.slane %v1827, 2
      %v1830 = vrot.slane %v1773, 7
      %v1831 = vsel %vm737, %v1829, %v1830
      %v1832 = vrot.slane %v1830, 2
      %v1833 = vrot.slane %v1781, 7
      %v1834 = vsel %vm737, %v1832, %v1833
      %v1835 = vrot.slane %v1833, 2
      %v1836 = vrot.slane %v1780, 7
      %v1837 = vsel %vm737, %v1835, %v1836
      %v1838 = vrot.slane %v1836, 2
      %v1839 = vrot.slane %v1782, 7
      %v1840 = vsel %vm737, %v1838, %v1839
      %v1841 = vrot.slane %v1839, 2
      %v1842 = vrot.slane %v1790, 7
      %v1843 = vsel %vm737, %v1841, %v1842
      %v1844 = vrot.slane %v1842, 2
      %v1845 = vrot.slane %v1798, 7
      %v1846 = vsel %vm737, %v1844, %v1845
      %v1847 = vrot.slane %v1845, 2
      %v1848 = vrot.slane %v1797, 7
      %v1849 = vsel %vm737, %v1847, %v1848
      %v1850 = vrot.slane %v1848, 2
      %v1851 = vrot.slane %v1799, 7
      %v1852 = vsel %vm737, %v1850, %v1851
      %v1853 = vrot.slane %v1851, 2
      %v1854 = vrot.slane %v1806, 7
      %v1855 = vsel %vm737, %v1853, %v1854
      %v1872 = vsel %vm867, %v1810, -inf
      %v1873 = vrot.slane %v1872, 4
      %v1874 = vmax.f32 %v1872, %v1873
      %v1875 = vrot.slane %v1874, 2
      %v1876 = vmax.f32 %v1874, %v1875
      %v1877 = vrot.slane %v1876, 1
      %v1878 = vmax.f32 %v1876, %v1877
      %v1879 = vsel %vm867, %v1813, -inf
      %v1880 = vrot.slane %v1879, 4
      %v1881 = vmax.f32 %v1879, %v1880
      %v1882 = vrot.slane %v1881, 2
      %v1883 = vmax.f32 %v1881, %v1882
      %v1884 = vrot.slane %v1883, 1
      %v1885 = vmax.f32 %v1883, %v1884
      %v1886 = vsel %vm867, %v1816, -inf
      %v1887 = vrot.slane %v1886, 4
      %v1888 = vmax.f32 %v1886, %v1887
      %v1889 = vrot.slane %v1888, 2
      %v1890 = vmax.f32 %v1888, %v1889
      %v1891 = vrot.slane %v1890, 1
      %v1892 = vmax.f32 %v1890, %v1891
      %v1893 = vsel %vm867, %v1819, -inf
      %v1894 = vrot.slane %v1893, 4
      %v1895 = vmax.f32 %v1893, %v1894
      %v1896 = vrot.slane %v1895, 2
      %v1897 = vmax.f32 %v1895, %v1896
      %v1898 = vrot.slane %v1897, 1
      %v1899 = vmax.f32 %v1897, %v1898
      %v1900 = vsel %vm867, %v1822, -inf
      %v1901 = vrot.slane %v1900, 4
      %v1902 = vmax.f32 %v1900, %v1901
      %v1903 = vrot.slane %v1902, 2
      %v1904 = vmax.f32 %v1902, %v1903
      %v1905 = vrot.slane %v1904, 1
      %v1906 = vmax.f32 %v1904, %v1905
      %v1907 = vsel %vm867, %v1825, -inf
      %v1908 = vrot.slane %v1907, 4
      %v1909 = vmax.f32 %v1907, %v1908
      %v1910 = vrot.slane %v1909, 2
      %v1911 = vmax.f32 %v1909, %v1910
      %v1912 = vrot.slane %v1911, 1
      %v1913 = vmax.f32 %v1911, %v1912
      %v1914 = vsel %vm867, %v1828, -inf
      %v1915 = vrot.slane %v1914, 4
      %v1916 = vmax.f32 %v1914, %v1915
      %v1917 = vrot.slane %v1916, 2
      %v1918 = vmax.f32 %v1916, %v1917
      %v1919 = vrot.slane %v1918, 1
      %v1920 = vmax.f32 %v1918, %v1919
      %v1921 = vsel %vm867, %v1831, -inf
      %v1922 = vrot.slane %v1921, 4
      %v1923 = vmax.f32 %v1921, %v1922
      %v1924 = vrot.slane %v1923, 2
      %v1925 = vmax.f32 %v1923, %v1924
      %v1926 = vrot.slane %v1925, 1
      %v1927 = vmax.f32 %v1925, %v1926
      %v1928 = vsel %vm867, %v1834, -inf
      %v1929 = vrot.slane %v1928, 4
      %v1930 = vmax.f32 %v1928, %v1929
      %v1931 = vrot.slane %v1930, 2
      %v1932 = vmax.f32 %v1930, %v1931
      %v1933 = vrot.slane %v1932, 1
      %v1934 = vmax.f32 %v1932, %v1933
      %v1935 = vsel %vm867, %v1837, -inf
      %v1936 = vrot.slane %v1935, 4
      %v1937 = vmax.f32 %v1935, %v1936
      %v1938 = vrot.slane %v1937, 2
      %v1939 = vmax.f32 %v1937, %v1938
      %v1940 = vrot.slane %v1939, 1
      %v1941 = vmax.f32 %v1939, %v1940
      %v1942 = vsel %vm867, %v1840, -inf
      %v1943 = vrot.slane %v1942, 4
      %v1944 = vmax.f32 %v1942, %v1943
      %v1945 = vrot.slane %v1944, 2
      %v1946 = vmax.f32 %v1944, %v1945
      %v1947 = vrot.slane %v1946, 1
      %v1948 = vmax.f32 %v1946, %v1947
      %v1949 = vsel %vm867, %v1843, -inf
      %v1950 = vrot.slane %v1949, 4
      %v1951 = vmax.f32 %v1949, %v1950
      %v1952 = vrot.slane %v1951, 2
      %v1953 = vmax.f32 %v1951, %v1952
      %v1954 = vrot.slane %v1953, 1
      %v1955 = vmax.f32 %v1953, %v1954
      %v1956 = vsel %vm867, %v1846, -inf
      %v1957 = vrot.slane %v1956, 4
      %v1958 = vmax.f32 %v1956, %v1957
      %v1959 = vrot.slane %v1958, 2
      %v1960 = vmax.f32 %v1958, %v1959
      %v1961 = vrot.slane %v1960, 1
      %v1962 = vmax.f32 %v1960, %v1961
      %v1963 = vsel %vm867, %v1849, -inf
      %v1964 = vrot.slane %v1963, 4
      %v1965 = vmax.f32 %v1963, %v1964
      %v1966 = vrot.slane %v1965, 2
      %v1967 = vmax.f32 %v1965, %v1966
      %v1968 = vrot.slane %v1967, 1
      %v1969 = vmax.f32 %v1967, %v1968
      %v1970 = vsel %vm867, %v1852, -inf
      %v1971 = vrot.slane %v1970, 4
      %v1972 = vmax.f32 %v1970, %v1971
      %v1973 = vrot.slane %v1972, 2
      %v1974 = vmax.f32 %v1972, %v1973
      %v1975 = vrot.slane %v1974, 1
      %v1976 = vmax.f32 %v1974, %v1975
      %v1977 = vsel %vm867, %v1855, -inf
      %v1978 = vrot.slane %v1977, 4
      %v1979 = vmax.f32 %v1977, %v1978
      %v1980 = vrot.slane %v1979, 2
      %v1981 = vmax.f32 %v1979, %v1980
      %v1982 = vrot.slane %v1981, 1
      %v1983 = vmax.f32 %v1981, %v1982
      %v2000 = vsel %vm732, %v1885, %v1878
      %v2001 = vsel %vm1125, %v1892, %v2000
      %v2002 = vsel %vm734, %v1899, %v2001
      %v2003 = vsel %vm1128, %v1906, %v2002
      %v2004 = vsel %vm736, %v1913, %v2003
      %v2005 = vsel %vm1131, %v1920, %v2004
      %v2006 = vsel %vm1133, %v1934, %v1927
      %v2007 = vsel %vm732, %v1941, %v2006
      %v2008 = vsel %vm1125, %v1948, %v2007
      %v2009 = vsel %vm734, %v1955, %v2008
      %v2010 = vsel %vm1128, %v1962, %v2009
      %v2011 = vsel %vm736, %v1969, %v2010
      %v2012 = vsel %vm1131, %v1976, %v2011
      %v2015 = vsel %vm731, %v1722, %v2005
      %v2016 = vsel %vm731, %v1983, %v1726
      %v2019 = vrot.slane %v2015, 4
      %v2020 = vrot.slane %v2012, 4
      %v2021 = vsel %vm1158, %v2019, %v2020
      %v2022 = vrot.slane %v2016, 4
      %v2023 = vsel %vm1158, %v2020, %v2022
      %v2027 = vsel %vm1158, 0.0, %v2019
      %v2028 = vsel %vm1250, %v2023, 0.0
      %v2031 = vrot.slane %v2027, 1
      %v2032 = vrot.slane %v2021, 1
      %v2033 = vsel %vm1179, %v2031, %v2032
      %v2034 = vrot.slane %v2028, 1
      %v2035 = vsel %vm1179, %v2032, %v2034
      %v2036 = vsel %vm1179, %v2034, %v1189
      %2037 = vrot.lane.b32.xlu0 %v2033, 64
      %v2038 = vpop.permute.xlu0 %2037
      %2039 = vrot.lane.b32.xlu0 %v2035, 64
      %v2040 = vpop.permute.xlu0 %2039
      %2041 = vrot.lane.b32.xlu0 %v2036, 64
      %v2042 = vpop.permute.xlu0 %2041
      %2043 = vrot.lane.b32.xlu0 %v1189, 64
      %v2044 = vpop.permute.xlu0 %2043
      %v2049 = vsel %vm1206, %v2027, %v2038
      %v2050 = vsel %vm1206, %v2021, %v2040
      %v2051 = vsel %vm1206, %v2028, %v2042
      %v2052 = vsel %vm1206, 0.0, %v2044
      %v2053 = vld [vmem:[%s7] sm:$0xff]
      %v2054 = vld [vmem:[%s7 + $0x8] sm:$0xff]
      %v2055 = vld [vmem:[%s7 + $0x10] sm:$0xff]
      %v2056 = vld [vmem:[%s7 + $0x18] sm:$0xff]
      %v2057 = vld [vmem:[%s7 + $0x20] sm:$0xff]
      %v2058 = vld [vmem:[%s7 + $0x28] sm:$0xff]
      %v2059 = vld [vmem:[%s7 + $0x30] sm:$0xff]
      %v2060 = vld [vmem:[%s7 + $0x38] sm:$0xff]
      %v2061 = vld [vmem:[%s7 + $0x40] sm:$0xff]
      %v2062 = vld [vmem:[%s7 + $0x48] sm:$0xff]
      %v2063 = vld [vmem:[%s7 + $0x50] sm:$0xff]
      %v2064 = vld [vmem:[%s7 + $0x58] sm:$0xff]
      %v2065 = vld [vmem:[%s7 + $0x60] sm:$0xff]
      %v2066 = vld [vmem:[%s7 + $0x68] sm:$0xff]
      %v2067 = vld [vmem:[%s7 + $0x70] sm:$0xff]
      %v2068 = vld [vmem:[%s7 + $0x78] sm:$0xff]
      %s2069 = scalar_lea.vmem %s7, 128
      %v2070 = vld [vmem:[%s2069] sm:$0xff]
      %v2071 = vld [vmem:[%s2069 + $0x8] sm:$0xff]
      %v2072 = vld [vmem:[%s2069 + $0x10] sm:$0xff]
      %v2073 = vld [vmem:[%s2069 + $0x18] sm:$0xff]
      %v2074 = vld [vmem:[%s2069 + $0x20] sm:$0xff]
      %v2075 = vld [vmem:[%s2069 + $0x28] sm:$0xff]
      %v2076 = vld [vmem:[%s2069 + $0x30] sm:$0xff]
      %v2077 = vld [vmem:[%s2069 + $0x38] sm:$0xff]
      %v2078 = vld [vmem:[%s2069 + $0x40] sm:$0xff]
      %v2079 = vld [vmem:[%s2069 + $0x48] sm:$0xff]
      %v2080 = vld [vmem:[%s2069 + $0x50] sm:$0xff]
      %v2081 = vld [vmem:[%s2069 + $0x58] sm:$0xff]
      %v2082 = vld [vmem:[%s2069 + $0x60] sm:$0xff]
      %v2083 = vld [vmem:[%s2069 + $0x68] sm:$0xff]
      %v2084 = vld [vmem:[%s2069 + $0x70] sm:$0xff]
      %v2085 = vld [vmem:[%s2069 + $0x78] sm:$0xff]
      %v2089 = vrot.slane %v2049, 2
      %v2090 = vrot.slane %v2050, 2
      %v2091 = vsel %vm1250, %v2089, %v2090
      %v2092 = vrot.slane %v2051, 2
      %v2093 = vsel %vm1250, %v2090, %v2092
      %2097 = vmatprep.subr.mxu0 0.0
      %2098 = vmatpush1.msra.mxu0 %v2085
      %2099 = vmatprep.subr.mxu0 0.0
      %2100 = vmatpush1.msra.mxu0 %v2084
      %2101 = vmatprep.subr.mxu0 0.0
      %2102 = vmatpush1.msra.mxu0 %v2083
      %2103 = vmatprep.subr.mxu0 0.0
      %2104 = vmatpush1.msra.mxu0 %v2082
      %2105 = vmatprep.subr.mxu0 0.0
      %2106 = vmatpush1.msra.mxu0 %v2081
      %2107 = vmatprep.subr.mxu0 0.0
      %2108 = vmatpush1.msra.mxu0 %v2080
      %2109 = vmatprep.subr.mxu0 0.0
      %2110 = vmatpush1.msra.mxu0 %v2079
      %2111 = vmatprep.subr.mxu0 0.0
      %2112 = vmatpush1.msra.mxu0 %v2078
      %2113 = vmatprep.subr.mxu0 0.0
      %2114 = vmatpush1.msra.mxu0 %v2077
      %2115 = vmatprep.subr.mxu0 0.0
      %2116 = vmatpush1.msra.mxu0 %v2076
      %2117 = vmatprep.subr.mxu0 0.0
      %2118 = vmatpush1.msra.mxu0 %v2075
      %2119 = vmatprep.subr.mxu0 0.0
      %2120 = vmatpush1.msra.mxu0 %v2074
      %2121 = vmatprep.subr.mxu0 0.0
      %2122 = vmatpush1.msra.mxu0 %v2073
      %2123 = vmatprep.subr.mxu0 0.0
      %2124 = vmatpush1.msra.mxu0 %v2072
      %2125 = vmatprep.subr.mxu0 0.0
      %2126 = vmatpush1.msra.mxu0 %v2071
      %2127 = vmatprep.subr.mxu0 0.0
      %2128 = vmatpush1.msra.mxu0 %v2070
      %2129 = vmatprep.subr.mxu0 0.0
      %2130 = vmatpush2.msra.mxu0 0.0
      %2131 = vmatprep.subr.mxu0 0.0
      %2132 = vmatpush2.msra.mxu0 0.0
      %2133 = vmatprep.subr.mxu0 0.0
      %2134 = vmatpush2.msra.mxu0 0.0
      %2135 = vmatprep.subr.mxu0 0.0
      %2136 = vmatpush2.msra.mxu0 0.0
      %2137 = vmatprep.subr.mxu0 0.0
      %2138 = vmatpush2.msra.mxu0 0.0
      %2139 = vmatprep.subr.mxu0 0.0
      %2140 = vmatpush2.msra.mxu0 0.0
      %2141 = vmatprep.subr.mxu0 0.0
      %2142 = vmatpush2.msra.mxu0 0.0
      %2143 = vmatprep.subr.mxu0 0.0
      %2144 = vmatpush2.msra.mxu0 0.0
      %2145 = vmatprep.subr.mxu0 0.0
      %2146 = vmatpush2.msra.mxu0 0.0
      %2147 = vmatprep.subr.mxu0 0.0
      %2148 = vmatpush2.msra.mxu0 0.0
      %2149 = vmatprep.subr.mxu0 0.0
      %2150 = vmatpush2.msra.mxu0 0.0
      %2151 = vmatprep.subr.mxu0 0.0
      %2152 = vmatpush2.msra.mxu0 0.0
      %2153 = vmatprep.subr.mxu0 0.0
      %2154 = vmatpush2.msra.mxu0 0.0
      %2155 = vmatprep.subr.mxu0 0.0
      %2156 = vmatpush2.msra.mxu0 0.0
      %2157 = vmatprep.subr.mxu0 0.0
      %2158 = vmatpush2.msra.mxu0 0.0
      %2159 = vmatprep.subr.mxu0 0.0
      %2160 = vmatpush2.msra.mxu0 0.0
      %2161 = vmatprep.mubr.f32.mxu0 0.0
      %2162 = vmatmul.mubr.f32.gmra.mxu0 %v2091
      %v2163 = vpop.f32.mrf.mxu0
      %v2164 = vadd.f32 0.0, %v2163
      %v2165 = vpop.f32.mrf.mxu0
      %2166 = vmatprep.mubr.f32.mxu0 0.0
      %2167 = vmatmul.mubr.f32.gmra.mxu0 %v2093
      %v2168 = vpop.f32.mrf.mxu0
      %v2169 = vadd.f32 0.0, %v2168
      %v2170 = vpop.f32.mrf.mxu0
      %2171 = vmatprep.mubr.f32.mxu0 0.0
      %2172 = vmatmul.mubr.f32.gmra.mxu0 %v2092
      %v2173 = vpop.f32.mrf.mxu0
      %v2174 = vadd.f32 0.0, %v2173
      %v2175 = vpop.f32.mrf.mxu0
      %2176 = vdwg.mxu0
      %2177 = vmatprep.subr.mxu0 0.0
      %2178 = vmatpush1.msra.mxu0 %v2068
      %2179 = vmatprep.subr.mxu0 0.0
      %2180 = vmatpush1.msra.mxu0 %v2067
      %2181 = vmatprep.subr.mxu0 0.0
      %2182 = vmatpush1.msra.mxu0 %v2066
      %2183 = vmatprep.subr.mxu0 0.0
      %2184 = vmatpush1.msra.mxu0 %v2065
      %2185 = vmatprep.subr.mxu0 0.0
      %2186 = vmatpush1.msra.mxu0 %v2064
      %2187 = vmatprep.subr.mxu0 0.0
      %2188 = vmatpush1.msra.mxu0 %v2063
      %2189 = vmatprep.subr.mxu0 0.0
      %2190 = vmatpush1.msra.mxu0 %v2062
      %2191 = vmatprep.subr.mxu0 0.0
      %2192 = vmatpush1.msra.mxu0 %v2061
      %2193 = vmatprep.subr.mxu0 0.0
      %2194 = vmatpush1.msra.mxu0 %v2060
      %2195 = vmatprep.subr.mxu0 0.0
      %2196 = vmatpush1.msra.mxu0 %v2059
      %2197 = vmatprep.subr.mxu0 0.0
      %2198 = vmatpush1.msra.mxu0 %v2058
      %2199 = vmatprep.subr.mxu0 0.0
      %2200 = vmatpush1.msra.mxu0 %v2057
      %2201 = vmatprep.subr.mxu0 0.0
      %2202 = vmatpush1.msra.mxu0 %v2056
      %2203 = vmatprep.subr.mxu0 0.0
      %2204 = vmatpush1.msra.mxu0 %v2055
      %2205 = vmatprep.subr.mxu0 0.0
      %2206 = vmatpush1.msra.mxu0 %v2054
      %2207 = vmatprep.subr.mxu0 0.0
      %2208 = vmatpush1.msra.mxu0 %v2053
      %2209 = vmatprep.subr.mxu0 0.0
      %2210 = vmatpush2.msra.mxu0 0.0
      %2211 = vmatprep.subr.mxu0 0.0
      %2212 = vmatpush2.msra.mxu0 0.0
      %2213 = vmatprep.subr.mxu0 0.0
      %2214 = vmatpush2.msra.mxu0 0.0
      %2215 = vmatprep.subr.mxu0 0.0
      %2216 = vmatpush2.msra.mxu0 0.0
      %2217 = vmatprep.subr.mxu0 0.0
      %2218 = vmatpush2.msra.mxu0 0.0
      %2219 = vmatprep.subr.mxu0 0.0
      %2220 = vmatpush2.msra.mxu0 0.0
      %2221 = vmatprep.subr.mxu0 0.0
      %2222 = vmatpush2.msra.mxu0 0.0
      %2223 = vmatprep.subr.mxu0 0.0
      %2224 = vmatpush2.msra.mxu0 0.0
      %2225 = vmatprep.subr.mxu0 0.0
      %2226 = vmatpush2.msra.mxu0 0.0
      %2227 = vmatprep.subr.mxu0 0.0
      %2228 = vmatpush2.msra.mxu0 0.0
      %2229 = vmatprep.subr.mxu0 0.0
      %2230 = vmatpush2.msra.mxu0 0.0
      %2231 = vmatprep.subr.mxu0 0.0
      %2232 = vmatpush2.msra.mxu0 0.0
      %2233 = vmatprep.subr.mxu0 0.0
      %2234 = vmatpush2.msra.mxu0 0.0
      %2235 = vmatprep.subr.mxu0 0.0
      %2236 = vmatpush2.msra.mxu0 0.0
      %2237 = vmatprep.subr.mxu0 0.0
      %2238 = vmatpush2.msra.mxu0 0.0
      %2239 = vmatprep.subr.mxu0 0.0
      %2240 = vmatpush2.msra.mxu0 0.0
      %2241 = vmatprep.mubr.f32.mxu0 0.0
      %2242 = vmatmul.mubr.f32.gmra.mxu0 %v2049
      %v2243 = vpop.f32.mrf.mxu0
      %v2244 = vadd.f32 %v2164, %v2243
      %v2245 = vpop.f32.mrf.mxu0
      %2246 = vmatprep.mubr.f32.mxu0 0.0
      %2247 = vmatmul.mubr.f32.gmra.mxu0 %v2050
      %v2248 = vpop.f32.mrf.mxu0
      %v2249 = vadd.f32 %v2169, %v2248
      %v2250 = vpop.f32.mrf.mxu0
      %2251 = vmatprep.mubr.f32.mxu0 0.0
      %2252 = vmatmul.mubr.f32.gmra.mxu0 %v2051
      %v2253 = vpop.f32.mrf.mxu0
      %v2254 = vadd.f32 %v2174, %v2253
      %v2255 = vpop.f32.mrf.mxu0
      %2256 = vdwg.mxu0
      %s2257 = scalar_lea.vmem %s7, 256
      %v2258 = vld [vmem:[%s2257] sm:$0xff]
      %v2259 = vld [vmem:[%s2257 + $0x8] sm:$0xff]
      %v2260 = vld [vmem:[%s2257 + $0x10] sm:$0xff]
      %v2261 = vld [vmem:[%s2257 + $0x18] sm:$0xff]
      %v2262 = vld [vmem:[%s2257 + $0x20] sm:$0xff]
      %v2263 = vld [vmem:[%s2257 + $0x28] sm:$0xff]
      %v2264 = vld [vmem:[%s2257 + $0x30] sm:$0xff]
      %v2265 = vld [vmem:[%s2257 + $0x38] sm:$0xff]
      %v2266 = vld [vmem:[%s2257 + $0x40] sm:$0xff]
      %v2267 = vld [vmem:[%s2257 + $0x48] sm:$0xff]
      %v2268 = vld [vmem:[%s2257 + $0x50] sm:$0xff]
      %v2269 = vld [vmem:[%s2257 + $0x58] sm:$0xff]
      %v2270 = vld [vmem:[%s2257 + $0x60] sm:$0xff]
      %v2271 = vld [vmem:[%s2257 + $0x68] sm:$0xff]
      %v2272 = vld [vmem:[%s2257 + $0x70] sm:$0xff]
      %v2273 = vld [vmem:[%s2257 + $0x78] sm:$0xff]
      %v2274 = vrot.slane %v2049, 4
      %v2275 = vrot.slane %v2050, 4
      %v2276 = vsel %vm1158, %v2274, %v2275
      %v2277 = vrot.slane %v2051, 4
      %v2278 = vsel %vm1158, %v2275, %v2277
      %2282 = vmatprep.subr.mxu0 0.0
      %2283 = vmatpush1.msra.mxu0 %v2273
      %2284 = vmatprep.subr.mxu0 0.0
      %2285 = vmatpush1.msra.mxu0 %v2272
      %2286 = vmatprep.subr.mxu0 0.0
      %2287 = vmatpush1.msra.mxu0 %v2271
      %2288 = vmatprep.subr.mxu0 0.0
      %2289 = vmatpush1.msra.mxu0 %v2270
      %2290 = vmatprep.subr.mxu0 0.0
      %2291 = vmatpush1.msra.mxu0 %v2269
      %2292 = vmatprep.subr.mxu0 0.0
      %2293 = vmatpush1.msra.mxu0 %v2268
      %2294 = vmatprep.subr.mxu0 0.0
      %2295 = vmatpush1.msra.mxu0 %v2267
      %2296 = vmatprep.subr.mxu0 0.0
      %2297 = vmatpush1.msra.mxu0 %v2266
      %2298 = vmatprep.subr.mxu0 0.0
      %2299 = vmatpush1.msra.mxu0 %v2265
      %2300 = vmatprep.subr.mxu0 0.0
      %2301 = vmatpush1.msra.mxu0 %v2264
      %2302 = vmatprep.subr.mxu0 0.0
      %2303 = vmatpush1.msra.mxu0 %v2263
      %2304 = vmatprep.subr.mxu0 0.0
      %2305 = vmatpush1.msra.mxu0 %v2262
      %2306 = vmatprep.subr.mxu0 0.0
      %2307 = vmatpush1.msra.mxu0 %v2261
      %2308 = vmatprep.subr.mxu0 0.0
      %2309 = vmatpush1.msra.mxu0 %v2260
      %2310 = vmatprep.subr.mxu0 0.0
      %2311 = vmatpush1.msra.mxu0 %v2259
      %2312 = vmatprep.subr.mxu0 0.0
      %2313 = vmatpush1.msra.mxu0 %v2258
      %2314 = vmatprep.subr.mxu0 0.0
      %2315 = vmatpush2.msra.mxu0 0.0
      %2316 = vmatprep.subr.mxu0 0.0
      %2317 = vmatpush2.msra.mxu0 0.0
      %2318 = vmatprep.subr.mxu0 0.0
      %2319 = vmatpush2.msra.mxu0 0.0
      %2320 = vmatprep.subr.mxu0 0.0
      %2321 = vmatpush2.msra.mxu0 0.0
      %2322 = vmatprep.subr.mxu0 0.0
      %2323 = vmatpush2.msra.mxu0 0.0
      %2324 = vmatprep.subr.mxu0 0.0
      %2325 = vmatpush2.msra.mxu0 0.0
      %2326 = vmatprep.subr.mxu0 0.0
      %2327 = vmatpush2.msra.mxu0 0.0
      %2328 = vmatprep.subr.mxu0 0.0
      %2329 = vmatpush2.msra.mxu0 0.0
      %2330 = vmatprep.subr.mxu0 0.0
      %2331 = vmatpush2.msra.mxu0 0.0
      %2332 = vmatprep.subr.mxu0 0.0
      %2333 = vmatpush2.msra.mxu0 0.0
      %2334 = vmatprep.subr.mxu0 0.0
      %2335 = vmatpush2.msra.mxu0 0.0
      %2336 = vmatprep.subr.mxu0 0.0
      %2337 = vmatpush2.msra.mxu0 0.0
      %2338 = vmatprep.subr.mxu0 0.0
      %2339 = vmatpush2.msra.mxu0 0.0
      %2340 = vmatprep.subr.mxu0 0.0
      %2341 = vmatpush2.msra.mxu0 0.0
      %2342 = vmatprep.subr.mxu0 0.0
      %2343 = vmatpush2.msra.mxu0 0.0
      %2344 = vmatprep.subr.mxu0 0.0
      %2345 = vmatpush2.msra.mxu0 0.0
      %2346 = vmatprep.mubr.f32.mxu0 0.0
      %2347 = vmatmul.mubr.f32.gmra.mxu0 %v2276
      %v2348 = vpop.f32.mrf.mxu0
      %v2349 = vadd.f32 0.0, %v2348
      %v2350 = vpop.f32.mrf.mxu0
      %2351 = vmatprep.mubr.f32.mxu0 0.0
      %2352 = vmatmul.mubr.f32.gmra.mxu0 %v2278
      %v2353 = vpop.f32.mrf.mxu0
      %v2354 = vadd.f32 0.0, %v2353
      %v2355 = vpop.f32.mrf.mxu0
      %2356 = vmatprep.mubr.f32.mxu0 0.0
      %2357 = vmatmul.mubr.f32.gmra.mxu0 %v2277
      %v2358 = vpop.f32.mrf.mxu0
      %v2359 = vadd.f32 0.0, %v2358
      %v2360 = vpop.f32.mrf.mxu0
      %2361 = vdwg.mxu0
      %v2362 = vadd.f32 %v2244, %v2349
      %v2363 = vadd.f32 %v2249, %v2354
      %v2364 = vadd.f32 %v2254, %v2359
      %s2365 = scalar_lea.vmem %s7, 384
      %v2366 = vld [vmem:[%s2365] sm:$0xff]
      %v2367 = vld [vmem:[%s2365 + $0x8] sm:$0xff]
      %v2368 = vld [vmem:[%s2365 + $0x10] sm:$0xff]
      %v2369 = vld [vmem:[%s2365 + $0x18] sm:$0xff]
      %v2370 = vld [vmem:[%s2365 + $0x20] sm:$0xff]
      %v2371 = vld [vmem:[%s2365 + $0x28] sm:$0xff]
      %v2372 = vld [vmem:[%s2365 + $0x30] sm:$0xff]
      %v2373 = vld [vmem:[%s2365 + $0x38] sm:$0xff]
      %v2374 = vld [vmem:[%s2365 + $0x40] sm:$0xff]
      %v2375 = vld [vmem:[%s2365 + $0x48] sm:$0xff]
      %v2376 = vld [vmem:[%s2365 + $0x50] sm:$0xff]
      %v2377 = vld [vmem:[%s2365 + $0x58] sm:$0xff]
      %v2378 = vld [vmem:[%s2365 + $0x60] sm:$0xff]
      %v2379 = vld [vmem:[%s2365 + $0x68] sm:$0xff]
      %v2380 = vld [vmem:[%s2365 + $0x70] sm:$0xff]
      %v2381 = vld [vmem:[%s2365 + $0x78] sm:$0xff]
      %v2383 = vrot.slane %v2049, 6
      %v2384 = vrot.slane %v2050, 6
      %v2385 = vsel %vm1588, %v2383, %v2384
      %v2386 = vrot.slane %v2051, 6
      %v2387 = vsel %vm1588, %v2384, %v2386
      %v2388 = vrot.slane %v2052, 6
      %v2389 = vsel %vm1588, %v2386, %v2388
      %2393 = vmatprep.subr.mxu0 0.0
      %2394 = vmatpush1.msra.mxu0 %v2381
      %2395 = vmatprep.subr.mxu0 0.0
      %2396 = vmatpush1.msra.mxu0 %v2380
      %2397 = vmatprep.subr.mxu0 0.0
      %2398 = vmatpush1.msra.mxu0 %v2379
      %2399 = vmatprep.subr.mxu0 0.0
      %2400 = vmatpush1.msra.mxu0 %v2378
      %2401 = vmatprep.subr.mxu0 0.0
      %2402 = vmatpush1.msra.mxu0 %v2377
      %2403 = vmatprep.subr.mxu0 0.0
      %2404 = vmatpush1.msra.mxu0 %v2376
      %2405 = vmatprep.subr.mxu0 0.0
      %2406 = vmatpush1.msra.mxu0 %v2375
      %2407 = vmatprep.subr.mxu0 0.0
      %2408 = vmatpush1.msra.mxu0 %v2374
      %2409 = vmatprep.subr.mxu0 0.0
      %2410 = vmatpush1.msra.mxu0 %v2373
      %2411 = vmatprep.subr.mxu0 0.0
      %2412 = vmatpush1.msra.mxu0 %v2372
      %2413 = vmatprep.subr.mxu0 0.0
      %2414 = vmatpush1.msra.mxu0 %v2371
      %2415 = vmatprep.subr.mxu0 0.0
      %2416 = vmatpush1.msra.mxu0 %v2370
      %2417 = vmatprep.subr.mxu0 0.0
      %2418 = vmatpush1.msra.mxu0 %v2369
      %2419 = vmatprep.subr.mxu0 0.0
      %2420 = vmatpush1.msra.mxu0 %v2368
      %2421 = vmatprep.subr.mxu0 0.0
      %2422 = vmatpush1.msra.mxu0 %v2367
      %2423 = vmatprep.subr.mxu0 0.0
      %2424 = vmatpush1.msra.mxu0 %v2366
      %2425 = vmatprep.subr.mxu0 0.0
      %2426 = vmatpush2.msra.mxu0 0.0
      %2427 = vmatprep.subr.mxu0 0.0
      %2428 = vmatpush2.msra.mxu0 0.0
      %2429 = vmatprep.subr.mxu0 0.0
      %2430 = vmatpush2.msra.mxu0 0.0
      %2431 = vmatprep.subr.mxu0 0.0
      %2432 = vmatpush2.msra.mxu0 0.0
      %2433 = vmatprep.subr.mxu0 0.0
      %2434 = vmatpush2.msra.mxu0 0.0
      %2435 = vmatprep.subr.mxu0 0.0
      %2436 = vmatpush2.msra.mxu0 0.0
      %2437 = vmatprep.subr.mxu0 0.0
      %2438 = vmatpush2.msra.mxu0 0.0
      %2439 = vmatprep.subr.mxu0 0.0
      %2440 = vmatpush2.msra.mxu0 0.0
      %2441 = vmatprep.subr.mxu0 0.0
      %2442 = vmatpush2.msra.mxu0 0.0
      %2443 = vmatprep.subr.mxu0 0.0
      %2444 = vmatpush2.msra.mxu0 0.0
      %2445 = vmatprep.subr.mxu0 0.0
      %2446 = vmatpush2.msra.mxu0 0.0
      %2447 = vmatprep.subr.mxu0 0.0
      %2448 = vmatpush2.msra.mxu0 0.0
      %2449 = vmatprep.subr.mxu0 0.0
      %2450 = vmatpush2.msra.mxu0 0.0
      %2451 = vmatprep.subr.mxu0 0.0
      %2452 = vmatpush2.msra.mxu0 0.0
      %2453 = vmatprep.subr.mxu0 0.0
      %2454 = vmatpush2.msra.mxu0 0.0
      %2455 = vmatprep.subr.mxu0 0.0
      %2456 = vmatpush2.msra.mxu0 0.0
      %2457 = vmatprep.mubr.f32.mxu0 0.0
      %2458 = vmatmul.mubr.f32.gmra.mxu0 %v2385
      %v2459 = vpop.f32.mrf.mxu0
      %v2460 = vadd.f32 0.0, %v2459
      %v2461 = vpop.f32.mrf.mxu0
      %2462 = vmatprep.mubr.f32.mxu0 0.0
      %2463 = vmatmul.mubr.f32.gmra.mxu0 %v2387
      %v2464 = vpop.f32.mrf.mxu0
      %v2465 = vadd.f32 0.0, %v2464
      %v2466 = vpop.f32.mrf.mxu0
      %2467 = vmatprep.mubr.f32.mxu0 0.0
      %2468 = vmatmul.mubr.f32.gmra.mxu0 %v2389
      %v2469 = vpop.f32.mrf.mxu0
      %v2470 = vadd.f32 0.0, %v2469
      %v2471 = vpop.f32.mrf.mxu0
      %2472 = vdwg.mxu0
      %v2473 = vadd.f32 %v2362, %v2460
      %v2474 = vadd.f32 %v2363, %v2465
      %v2475 = vadd.f32 %v2364, %v2470
      %v2476 = vld [vmem:[%s8] sm:$0x1]
      %v2478 = vlaneseq
      %v2479 = vshrl.u32 %v2478, 7
      %v2480 = vsub.s32 0, %v2479
      %v2481 = vrot.slane %v2476, %v2480
      %v2483 = vmul.f32 %v2473, %v2481
      %v2484 = vmul.f32 %v2474, %v2481
      %v2485 = vmul.f32 %v2475, %v2481
      %v2486 = vld [vmem:[%s9] sm:$0x1]
      %v2488 = vlaneseq
      %v2489 = vshrl.u32 %v2488, 7
      %v2490 = vsub.s32 0, %v2489
      %v2491 = vrot.slane %v2486, %v2490
      %v2493 = vadd.f32 %v2483, %v2491
      %v2494 = vadd.f32 %v2484, %v2491
      %v2495 = vadd.f32 %v2485, %v2491
      %v2496 = vmax.f32 %v2493, 0.0
      %v2497 = vmax.f32 %v2494, 0.0
      %v2498 = vmax.f32 %v2495, 0.0
      %v2502 = vcombine.high %v2496, %v2496
      %v2504 = vunpack.c.l.s4 1983009808
      %v2505 = vunpack.c.0.s8 %v2504
      %v2506 = vlaneseq
      %v2507 = vshrl.u32 %v2506, 7
      %v2508 = vsub.s32 %v2505, %v2507
      %v2509 = vrot.slane %v2496, %v2508
      %v2511 = vunpack.c.l.s4 1983009808
      %v2512 = vunpack.c.0.s8 %v2511
      %v2513 = vlaneseq
      %v2514 = vshrl.u32 %v2513, 7
      %v2515 = vsub.s32 %v2512, %v2514
      %v2516 = vrot.slane %v2502, %v2515
      %v2517 = vcombine.high %v2509, %v2509
      %v2518 = vcombine.high %v2516, %v2516
      %v2519 = vcombine.high %v2497, %v2497
      %v2521 = vunpack.c.l.s4 1983009808
      %v2522 = vunpack.c.0.s8 %v2521
      %v2523 = vlaneseq
      %v2524 = vshrl.u32 %v2523, 7
      %v2525 = vsub.s32 %v2522, %v2524
      %v2526 = vrot.slane %v2497, %v2525
      %v2528 = vunpack.c.l.s4 1983009808
      %v2529 = vunpack.c.0.s8 %v2528
      %v2530 = vlaneseq
      %v2531 = vshrl.u32 %v2530, 7
      %v2532 = vsub.s32 %v2529, %v2531
      %v2533 = vrot.slane %v2519, %v2532
      %v2534 = vcombine.high %v2526, %v2526
      %v2535 = vcombine.high %v2533, %v2533
      %v2537 = vunpack.c.l.s4 1983009808
      %v2538 = vunpack.c.0.s8 %v2537
      %v2539 = vlaneseq
      %v2540 = vshrl.u32 %v2539, 7
      %v2541 = vsub.s32 %v2538, %v2540
      %v2542 = vrot.slane %v2498, %v2541
      %v2543 = vcombine.high %v2542, %v2542
      %v2544 = vrot.slane %v2509, 7
      %v2545 = vrot.slane %v2544, 2
      %v2546 = vrot.slane %v2517, 7
      %v2547 = vsel %vm737, %v2545, %v2546
      %v2548 = vrot.slane %v2546, 2
      %v2549 = vrot.slane %v2516, 7
      %v2550 = vsel %vm737, %v2548, %v2549
      %v2551 = vrot.slane %v2549, 2
      %v2552 = vrot.slane %v2518, 7
      %v2553 = vsel %vm737, %v2551, %v2552
      %v2554 = vrot.slane %v2552, 2
      %v2555 = vrot.slane %v2526, 7
      %v2556 = vsel %vm737, %v2554, %v2555
      %v2557 = vrot.slane %v2555, 2
      %v2558 = vrot.slane %v2534, 7
      %v2559 = vsel %vm737, %v2557, %v2558
      %v2560 = vrot.slane %v2558, 2
      %v2561 = vrot.slane %v2533, 7
      %v2562 = vsel %vm737, %v2560, %v2561
      %v2563 = vrot.slane %v2561, 2
      %v2564 = vrot.slane %v2535, 7
      %v2565 = vsel %vm737, %v2563, %v2564
      %v2566 = vrot.slane %v2564, 2
      %v2567 = vrot.slane %v2542, 7
      %v2568 = vsel %vm737, %v2566, %v2567
      %v2569 = vrot.slane %v2567, 2
      %v2570 = vrot.slane %v2543, 7
      %v2571 = vsel %vm737, %v2569, %v2570
      %v2581 = vsel %vm1588, %v2547, -inf
      %v2582 = vrot.slane %v2581, 4
      %v2583 = vmax.f32 %v2581, %v2582
      %v2584 = vrot.slane %v2583, 2
      %v2585 = vmax.f32 %v2583, %v2584
      %v2586 = vrot.slane %v2585, 1
      %v2587 = vmax.f32 %v2585, %v2586
      %v2588 = vsel %vm1588, %v2550, -inf
      %v2589 = vrot.slane %v2588, 4
      %v2590 = vmax.f32 %v2588, %v2589
      %v2591 = vrot.slane %v2590, 2
      %v2592 = vmax.f32 %v2590, %v2591
      %v2593 = vrot.slane %v2592, 1
      %v2594 = vmax.f32 %v2592, %v2593
      %v2595 = vsel %vm1588, %v2553, -inf
      %v2596 = vrot.slane %v2595, 4
      %v2597 = vmax.f32 %v2595, %v2596
      %v2598 = vrot.slane %v2597, 2
      %v2599 = vmax.f32 %v2597, %v2598
      %v2600 = vrot.slane %v2599, 1
      %v2601 = vmax.f32 %v2599, %v2600
      %v2602 = vsel %vm1588, %v2556, -inf
      %v2603 = vrot.slane %v2602, 4
      %v2604 = vmax.f32 %v2602, %v2603
      %v2605 = vrot.slane %v2604, 2
      %v2606 = vmax.f32 %v2604, %v2605
      %v2607 = vrot.slane %v2606, 1
      %v2608 = vmax.f32 %v2606, %v2607
      %v2609 = vsel %vm1588, %v2559, -inf
      %v2610 = vrot.slane %v2609, 4
      %v2611 = vmax.f32 %v2609, %v2610
      %v2612 = vrot.slane %v2611, 2
      %v2613 = vmax.f32 %v2611, %v2612
      %v2614 = vrot.slane %v2613, 1
      %v2615 = vmax.f32 %v2613, %v2614
      %v2616 = vsel %vm1588, %v2562, -inf
      %v2617 = vrot.slane %v2616, 4
      %v2618 = vmax.f32 %v2616, %v2617
      %v2619 = vrot.slane %v2618, 2
      %v2620 = vmax.f32 %v2618, %v2619
      %v2621 = vrot.slane %v2620, 1
      %v2622 = vmax.f32 %v2620, %v2621
      %v2623 = vsel %vm1588, %v2565, -inf
      %v2624 = vrot.slane %v2623, 4
      %v2625 = vmax.f32 %v2623, %v2624
      %v2626 = vrot.slane %v2625, 2
      %v2627 = vmax.f32 %v2625, %v2626
      %v2628 = vrot.slane %v2627, 1
      %v2629 = vmax.f32 %v2627, %v2628
      %v2630 = vsel %vm1588, %v2568, -inf
      %v2631 = vrot.slane %v2630, 4
      %v2632 = vmax.f32 %v2630, %v2631
      %v2633 = vrot.slane %v2632, 2
      %v2634 = vmax.f32 %v2632, %v2633
      %v2635 = vrot.slane %v2634, 1
      %v2636 = vmax.f32 %v2634, %v2635
      %v2637 = vsel %vm1588, %v2571, -inf
      %v2638 = vrot.slane %v2637, 4
      %v2639 = vmax.f32 %v2637, %v2638
      %v2640 = vrot.slane %v2639, 2
      %v2641 = vmax.f32 %v2639, %v2640
      %v2642 = vrot.slane %v2641, 1
      %v2643 = vmax.f32 %v2641, %v2642
      %v2653 = vsel %vm732, %v2594, %v2587
      %v2654 = vsel %vm1125, %v2601, %v2653
      %v2655 = vsel %vm734, %v2608, %v2654
      %v2656 = vsel %vm1128, %v2615, %v2655
      %v2657 = vsel %vm736, %v2622, %v2656
      %v2658 = vsel %vm1131, %v2629, %v2657
      %v2659 = vsel %vm1133, %v2643, %v2636
      %v2661 = vsel %vm731, %v2496, %v2658
      %v2662 = vld [vmem:[%s10] sm:$0xff]
      %v2663 = vld [vmem:[%s10 + $0x8] sm:$0x3]
      %vm2664 = vcmask 80896
      %v2666 = vsel %vm2664, %v2662, 0
      %v2669 = vsel %vm2664, %v2663, 0
      %v2671 = vsel %vm1588, %v2659, 0
      %2673 = vmatprep.subr.mxu0 0.0
      %2674 = vmatpush1.msra.mxu0 0.0
      %2675 = vmatprep.subr.mxu0 0.0
      %2676 = vmatpush1.msra.mxu0 0.0
      %2677 = vmatprep.subr.mxu0 0.0
      %2678 = vmatpush1.msra.mxu0 0.0
      %2679 = vmatprep.subr.mxu0 0.0
      %2680 = vmatpush1.msra.mxu0 0.0
      %2681 = vmatprep.subr.mxu0 0.0
      %2682 = vmatpush1.msra.mxu0 0.0
      %2683 = vmatprep.subr.mxu0 0.0
      %2684 = vmatpush1.msra.mxu0 0.0
      %2685 = vmatprep.subr.mxu0 0.0
      %2686 = vmatpush1.msra.mxu0 0.0
      %2687 = vmatprep.subr.mxu0 0.0
      %2688 = vmatpush1.msra.mxu0 0.0
      %2689 = vmatprep.subr.mxu0 0.0
      %2690 = vmatpush1.msra.mxu0 0.0
      %2691 = vmatprep.subr.mxu0 0.0
      %2692 = vmatpush1.msra.mxu0 0.0
      %2693 = vmatprep.subr.mxu0 0.0
      %2694 = vmatpush1.msra.mxu0 0.0
      %2695 = vmatprep.subr.mxu0 0.0
      %2696 = vmatpush1.msra.mxu0 0.0
      %2697 = vmatprep.subr.mxu0 0.0
      %2698 = vmatpush1.msra.mxu0 0.0
      %2699 = vmatprep.subr.mxu0 0.0
      %2700 = vmatpush1.msra.mxu0 0.0
      %2701 = vmatprep.subr.mxu0 0.0
      %2702 = vmatpush1.msra.mxu0 %v2671
      %2703 = vmatprep.subr.mxu0 0.0
      %2704 = vmatpush1.msra.mxu0 %v2661
      %2705 = vmatprep.subr.mxu0 0.0
      %2706 = vmatpush2.msra.mxu0 0.0
      %2707 = vmatprep.subr.mxu0 0.0
      %2708 = vmatpush2.msra.mxu0 0.0
      %2709 = vmatprep.subr.mxu0 0.0
      %2710 = vmatpush2.msra.mxu0 0.0
      %2711 = vmatprep.subr.mxu0 0.0
      %2712 = vmatpush2.msra.mxu0 0.0
      %2713 = vmatprep.subr.mxu0 0.0
      %2714 = vmatpush2.msra.mxu0 0.0
      %2715 = vmatprep.subr.mxu0 0.0
      %2716 = vmatpush2.msra.mxu0 0.0
      %2717 = vmatprep.subr.mxu0 0.0
      %2718 = vmatpush2.msra.mxu0 0.0
      %2719 = vmatprep.subr.mxu0 0.0
      %2720 = vmatpush2.msra.mxu0 0.0
      %2721 = vmatprep.subr.mxu0 0.0
      %2722 = vmatpush2.msra.mxu0 0.0
      %2723 = vmatprep.subr.mxu0 0.0
      %2724 = vmatpush2.msra.mxu0 0.0
      %2725 = vmatprep.subr.mxu0 0.0
      %2726 = vmatpush2.msra.mxu0 0.0
      %2727 = vmatprep.subr.mxu0 0.0
      %2728 = vmatpush2.msra.mxu0 0.0
      %2729 = vmatprep.subr.mxu0 0.0
      %2730 = vmatpush2.msra.mxu0 0.0
      %2731 = vmatprep.subr.mxu0 0.0
      %2732 = vmatpush2.msra.mxu0 0.0
      %2733 = vmatprep.subr.mxu0 0.0
      %2734 = vmatpush2.msra.mxu0 0.0
      %2735 = vmatprep.subr.mxu0 0.0
      %2736 = vmatpush2.msra.mxu0 0.0
      %2737 = vmatprep.mubr.f32.mxu0 0.0
      %2738 = vmatmul.mubr.f32.gmra.mxu0 %v2666
      %v2739 = vpop.f32.mrf.mxu0
      %v2740 = vadd.f32 0.0, %v2739
      %v2741 = vpop.f32.mrf.mxu0
      %2742 = vmatprep.mubr.f32.mxu0 0.0
      %2743 = vmatmul.mubr.f32.gmra.mxu0 %v2669
      %v2744 = vpop.f32.mrf.mxu0
      %v2745 = vadd.f32 0.0, %v2744
      %v2746 = vpop.f32.mrf.mxu0
      %2747 = vdwg.mxu0
      %2748 = vst [vmem:[%s386] sm:$0xff] %v2740
      %2749 = vst [vmem:[%s386 + $0x8] sm:$0x3] %v2745
      %p2750 = scmp.lt.s32.totalorder %s22, 1
      %s2751 = scalar_select %p2750, %s22, 1
      %s2752 = smul.addr %s2751, 2
      %s2753 = smul.addr %s2752, 8
      %s2754 = scalar_lea.vmem %s11, %s2753
      // Predicated region
      $region65: #{cnn_forward.1} parent=63 // pred_check
        %p2755 = pneg %p276
      $region66: #{cnn_forward.1} parent=63 // pred_check_branch
        %2757 = sbr.rel (%p2755) target = $region68
      $region67: #{cnn_forward.1} parent=63 // pred_region
        _
      $region68: #{cnn_forward.1} parent=63 // pred_fallthru
        _
    $region64: #{cnn_forward.1} parent=5 // pred_fallthru
      _
    %p2758 = scmp.le.s32.totalorder 2, %s17
    // Predicated region
    $region69: #{cnn_forward.1} parent=5 // pred_check
      %p2759 = pneg %p2758
    $region70: #{cnn_forward.1} parent=5 // pred_check_branch
      %2761 = sbr.rel (%p2759) target = $region72
    $region71: #{cnn_forward.1} parent=5 // pred_region
      %s2762 = ssub.s32 %s17, 2
      // Predicated region
      $region73: #{cnn_forward.1} parent=71 // pred_check
        %p2763 = pneg %p282
      $region74: #{cnn_forward.1} parent=71 // pred_check_branch
        %2765 = sbr.rel (%p2763) target = $region76
      $region75: #{cnn_forward.1} parent=71 // pred_region
        %p2766 = scmp.lt.s32.totalorder %s23, 1
        %s2767 = scalar_select %p2766, %s23, 1
        %s2768 = smul.addr %s2767, 2
        %s2769 = smul.addr %s2768, 8
        %s2770 = scalar_lea.vmem %s11, %s2769
      $region76: #{cnn_forward.1} parent=71 // pred_fallthru
        _
    $region72: #{cnn_forward.1} parent=5 // pred_fallthru
      _
  $region6: #{cnn_forward.1} parent=0 // loop_footer
    %s21 = sadd.s32 1, %s17
  $region7: #{cnn_forward.1} parent=0 // loop_footer_branch
    %16 = sbr.rel target = $region3
  $region8: #{cnn_forward.1} parent=0 // loop_exit
    _

</llo_original>
